<compile_context>
chip_gen: v6e
topology: v6e:2x2x1
jax: 0.10.0
libtpu: 0.0.40
codegen_flags: <defaults>
</compile_context>

<pallas_src>
import functools

import jax
import jax.numpy as jnp
from jax.experimental import pallas as pl
from jax.experimental.pallas import tpu as pltpu


# --------------------------------------------------------------------------
# Fused kernel: QKV + 3-stream attention + output projections, one invocation
# --------------------------------------------------------------------------
def _wmsa_kernel(x_ref, qkv_ref, mkt_ref, bias_ref, pv_ref, out_ref,
                 *, B, N, H, D):
    """x_ref:    (B*N, 3C)        [a | b | c] tokens (lane-concatenated)
       qkv_ref:  (3C+1, 7C)       block-diag QKV weight (+ bias row).  Output
                                  columns: [q1*scale (C) | k1 k2 k3 | v1 v2 v3]
       mkt_ref:  (R, C)           0/1 head mask for the block-diag K operand,
                                  R = H*3*B*N, rows ordered (head, stream, win, key)
       bias_ref: (B*N, R)         rel-pos bias pre-tiled to the scores layout;
                                  cross-window entries = -1e30
       pv_ref:   (R+3C+1, 3C)     [0/1 V/segment mask ; block-diag proj W ; proj bias]
       out_ref:  (B*N, 3C)        [aa | ab | ac]
    """
    f32 = jnp.float32
    C = H * D
    BN = B * N
    NS = 3                       # number of (k, v) streams
    R = H * NS * BN              # scores columns

    def mm(x, w):                # (M, K) @ (K, N) on the MXU, f32 accumulate
        return jax.lax.dot_general(x, w, (((1,), (0,)), ((), ())),
                                   preferred_element_type=f32)

    def mm_nt(x, y):             # (M, K) x (N, K) -> (M, N), contract last dims
        return jax.lax.dot_general(x, y, (((1,), (1,)), ((), ())),
                                   preferred_element_type=f32)

    # ---- fused QKV projection: one matmul covers all three streams ---------
    y = mm(x_ref[...], qkv_ref[0:3 * C, :]) + qkv_ref[3 * C:3 * C + 1, :]   # (BN, 7C)
    q1 = y[:, 0:C]                       # (BN, C)  (qk scale already folded in)
    yk = y[:, C:4 * C]                   # (BN, 3C) [k1 | k2 | k3]
    yv = y[:, 4 * C:7 * C]               # (BN, 3C) [v1 | v2 | v3]

    # ---- block-diagonal K operand: rows ordered (head, stream, window, key) -
    k_cat = jnp.concatenate([yk[:, s * C:(s + 1) * C] for s in range(NS)],
                            axis=0)                                   # (NS*BN, C)
    b_kt = jnp.concatenate([k_cat] * H, axis=0) * mkt_ref[...]        # (R, C)

    # ---- scores for every (window, head, stream) in ONE matmul --------------
    s_full = mm_nt(q1, b_kt) + bias_ref[...]         # (BN, R); cross-window = -1e30
    m = jnp.max(s_full, axis=-1, keepdims=True)      # row max (valid for all segments)
    e = jnp.exp(s_full - m)                          # cross-window terms exp() to 0

    # ---- P@V and per-segment softmax denominators, one matmul each ----------
    m_v = pv_ref[0:R, :]                                           # (R, 3C) 0/1 mask
    b_v = jnp.concatenate([yv] * (H * NS), axis=0) * m_v           # (R, 3C) block-diag V
    numer = mm(e, b_v)                                             # (BN, 3C)
    denom = mm(e, m_v)                                             # (BN, 3C) segment sums
    o_attn = numer * pl.reciprocal(denom, approx=True)             # softmax(s) @ v

    # ---- fused block-diag output projection + single lane-dense store -------
    out = mm(o_attn, pv_ref[R:R + 3 * C, :]) + pv_ref[R + 3 * C:R + 3 * C + 1, :]
    out_ref[...] = out.astype(out_ref.dtype)

    # TODO(synk): `mask is not None` branch of the PyTorch module is not
    # implemented (mask=None semantics only); attn_drop/proj_drop are p=0.0.


# --------------------------------------------------------------------------
# One-time parameter prep (hoisted out of the per-call forward)
# --------------------------------------------------------------------------
def relative_position_index(window_size):
    Wh, Ww = window_size
    coords = jnp.stack(jnp.meshgrid(jnp.arange(Wh), jnp.arange(Ww),
                                    indexing="ij"))                  # (2, Wh, Ww)
    coords_flatten = coords.reshape(2, -1)                           # (2, N)
    rel = coords_flatten[:, :, None] - coords_flatten[:, None, :]    # (2, N, N)
    rel = rel.transpose(1, 2, 0)                                     # (N, N, 2)
    rel = rel.at[:, :, 0].add(Wh - 1)
    rel = rel.at[:, :, 1].add(Ww - 1)
    rel = rel.at[:, :, 0].multiply(2 * Ww - 1)
    return rel.sum(-1)                                               # (N, N)


def compute_relative_position_bias(rpb_table, window_size):
    Wh, Ww = window_size
    N = Wh * Ww
    idx = relative_position_index(window_size).reshape(-1)
    bias = rpb_table[idx].reshape(N, N, -1)                          # (N, N, H)
    return jnp.transpose(bias, (2, 0, 1)).astype(jnp.float32)        # (H, N, N)


def pack_window_attention_params(params, window_size, num_heads, num_windows):
    """Block-diagonal weight packing + score-layout mask / bias tables."""
    f32 = jnp.float32
    C = params["qkv1_w"].shape[0]
    H = num_heads
    D = C // H
    N = window_size[0] * window_size[1]
    B = num_windows
    BN = B * N
    NS = 3
    R = H * NS * BN
    scale = D ** (-0.5)

    # -- fused QKV: [xa|xb|xc] @ W = [q1*scale | k1 k2 k3 | v1 v2 v3] ---------
    W = jnp.zeros((3 * C, 7 * C), f32)
    W = W.at[0:C, 0:C].set(params["qkv1_w"][:, 0:C] * scale)
    for s, name in enumerate(("qkv1", "qkv2", "qkv3")):
        w = params[f"{name}_w"]
        W = W.at[s * C:(s + 1) * C, C + s * C:C + (s + 1) * C].set(w[:, C:2 * C])
        W = W.at[s * C:(s + 1) * C, 4 * C + s * C:4 * C + (s + 1) * C].set(w[:, 2 * C:3 * C])
    bvec = jnp.concatenate(
        [params["qkv1_b"][0:C] * scale]
        + [params[f"qkv{s + 1}_b"][C:2 * C] for s in range(NS)]
        + [params[f"qkv{s + 1}_b"][2 * C:3 * C] for s in range(NS)]).astype(f32)
    qkv_pack = jnp.concatenate([W, bvec.reshape(1, 7 * C)], axis=0)   # (3C+1, 7C)

    # -- scores-column decomposition: col = h*(NS*BN) + s*BN + b*N + m --------
    col = jnp.arange(R)
    h_col = col // (NS * BN)
    s_col = (col % (NS * BN)) // BN
    b_col = (col % BN) // N
    m_col = col % N

    # -- head mask for the block-diag K operand -------------------------------
    feat_h = jnp.arange(C) // D
    m_kt = (h_col[:, None] == feat_h[None, :]).astype(f32)            # (R, C)

    # -- rel-pos bias pre-tiled to scores layout; cross-window => -1e30 -------
    rel_bias = compute_relative_position_bias(params["rpb_table"], window_size)
    tok = jnp.arange(BN)
    b_row = tok // N
    n_row = tok % N
    bias_full = rel_bias[h_col[None, :], n_row[:, None], m_col[None, :]]  # (BN, R)
    bias_full = jnp.where(b_row[:, None] == b_col[None, :], bias_full,
                          jnp.float32(-1e30)).astype(f32)

    # -- V mask (doubles as the per-segment softmax-sum matrix) ---------------
    ocol = jnp.arange(3 * C)
    o_s = ocol // C
    o_h = (ocol % C) // D
    m_v = ((o_s[None, :] == s_col[:, None]) &
           (o_h[None, :] == h_col[:, None])).astype(f32)              # (R, 3C)

    # -- fused (block-diag) output projection ---------------------------------
    Wp = jnp.zeros((3 * C, 3 * C), f32)
    bp = []
    for s, name in enumerate(("proj1", "proj2", "proj3")):
        Wp = Wp.at[s * C:(s + 1) * C, s * C:(s + 1) * C].set(params[f"{name}_w"])
        bp.append(params[f"{name}_b"])
    bp = jnp.concatenate(bp).reshape(1, 3 * C).astype(f32)
    pv_pack = jnp.concatenate([m_v, Wp, bp], axis=0)                  # (R+3C+1, 3C)

    return {"qkv_pack": qkv_pack, "m_kt": m_kt,
            "bias_full": bias_full, "pv_pack": pv_pack}


# --------------------------------------------------------------------------
# Forward wrapper
# --------------------------------------------------------------------------
def window_attention_forward(a, b, c, packed, *, num_heads):
    B_, N, C = a.shape
    H = num_heads
    D = C // H
    BN = B_ * N
    R = H * 3 * BN

    x = jnp.concatenate([a.reshape(BN, C), b.reshape(BN, C), c.reshape(BN, C)],
                        axis=1)                                        # (BN, 3C)

    kernel = functools.partial(_wmsa_kernel, B=B_, N=N, H=H, D=D)

    flops = 2 * (BN * (3 * C) * (7 * C)        # fused QKV
                 + BN * C * R                  # scores
                 + 2 * BN * R * (3 * C)        # P@V + segment sums
                 + BN * (3 * C) * (3 * C))     # fused proj
    bytes_accessed = 4 * (x.size + packed["qkv_pack"].size + packed["m_kt"].size
                          + packed["bias_full"].size + packed["pv_pack"].size
                          + BN * 3 * C)
    vmem = pltpu.MemorySpace.VMEM

    out = pl.pallas_call(
        kernel,
        out_shape=jax.ShapeDtypeStruct((BN, 3 * C), jnp.float32),
        in_specs=[pl.BlockSpec(memory_space=vmem) for _ in range(5)],
        out_specs=pl.BlockSpec(memory_space=vmem),
        cost_estimate=pl.CostEstimate(flops=flops, transcendentals=BN * R,
                                      bytes_accessed=bytes_accessed),
    )(x, packed["qkv_pack"], packed["m_kt"], packed["bias_full"],
      packed["pv_pack"])

    aa = out[:, 0:C].reshape(B_, N, C)
    ab = out[:, C:2 * C].reshape(B_, N, C)
    ac = out[:, 2 * C:3 * C].reshape(B_, N, C)
    return aa, ab, ac


# --------------------------------------------------------------------------
# Pure-JAX reference (correctness check only)
# --------------------------------------------------------------------------
def reference_forward(a, b, c, params, window_size, num_heads):
    B_, N, C = a.shape
    H = num_heads
    D = C // H
    scale = D ** (-0.5)

    def qkv_project(x, w, bias):
        y = x.reshape(B_ * N, C) @ w + bias
        y = y.reshape(B_, N, 3, H, D).transpose(2, 0, 3, 1, 4)
        return y[0], y[1], y[2]

    q1, k1, v1 = qkv_project(a, params["qkv1_w"], params["qkv1_b"])
    _, k2, v2 = qkv_project(b, params["qkv2_w"], params["qkv2_b"])
    _, k3, v3 = qkv_project(c, params["qkv3_w"], params["qkv3_b"])
    q1 = q1 * scale

    rp_index = relative_position_index(window_size)
    rel_bias = params["rpb_table"][rp_index.reshape(-1)].reshape(N, N, H)
    rel_bias = rel_bias.transpose(2, 0, 1)[None]

    def one(k, v):
        s = jnp.einsum("bhnd,bhmd->bhnm", q1, k) + rel_bias
        p = jax.nn.softmax(s, axis=-1)
        return jnp.einsum("bhnm,bhmd->bhnd", p, v)

    def out_project(o, w, bias):
        y = o.transpose(0, 2, 1, 3).reshape(B_ * N, C) @ w + bias
        return y.reshape(B_, N, C)

    aa = out_project(one(k1, v1), params["proj1_w"], params["proj1_b"])
    ab = out_project(one(k2, v2), params["proj2_w"], params["proj2_b"])
    ac = out_project(one(k3, v3), params["proj3_w"], params["proj3_b"])
    return aa, ab, ac


# --------------------------------------------------------------------------
if __name__ == "__main__":
    key = jax.random.PRNGKey(0)

    dim = 32
    num_heads = 4
    window_size = (4, 4)
    N = window_size[0] * window_size[1]      # 16
    B_ = 2                                   # num_windows * B

    ks = jax.random.split(key, 16)

    def nrm(k, shape, std=0.02):
        return (std * jax.random.normal(k, shape)).astype(jnp.float32)

    params = {
        "qkv1_w": nrm(ks[0], (dim, 3 * dim)), "qkv1_b": nrm(ks[1], (3 * dim,)),
        "qkv2_w": nrm(ks[2], (dim, 3 * dim)), "qkv2_b": nrm(ks[3], (3 * dim,)),
        "qkv3_w": nrm(ks[4], (dim, 3 * dim)), "qkv3_b": nrm(ks[5], (3 * dim,)),
        "proj1_w": nrm(ks[6], (dim, dim)),    "proj1_b": nrm(ks[7], (dim,)),
        "proj2_w": nrm(ks[8], (dim, dim)),    "proj2_b": nrm(ks[9], (dim,)),
        "proj3_w": nrm(ks[10], (dim, dim)),   "proj3_b": nrm(ks[11], (dim,)),
        # trunc_normal_(std=0.02) init of the relative position bias table
        "rpb_table": (0.02 * jax.random.truncated_normal(
            ks[12], -2.0, 2.0,
            ((2 * window_size[0] - 1) * (2 * window_size[1] - 1), num_heads))
        ).astype(jnp.float32),
    }

    # One-time parameter prep: block-diag packing + masks + pre-tiled bias.
    packed = pack_window_attention_params(params, window_size, num_heads, B_)

    a = jax.random.normal(ks[13], (B_, N, dim), dtype=jnp.float32)
    b = jax.random.normal(ks[14], (B_, N, dim), dtype=jnp.float32)
    c = jax.random.normal(ks[15], (B_, N, dim), dtype=jnp.float32)

    fwd = jax.jit(functools.partial(window_attention_forward,
                                    num_heads=num_heads))
    aa, ab, ac = fwd(a, b, c, packed)
    jax.block_until_ready((aa, ab, ac))

    ra, rb, rc = reference_forward(a, b, c, params, window_size, num_heads)
    for got, ref in ((aa, ra), (ab, rb), (ac, rc)):
        assert got.shape == (B_, N, dim)
        assert jnp.max(jnp.abs(got - ref)) < 1e-3

    print("KERNEL_OK")
</pallas_src>

<mosaic_0001>
module attributes {stable_mosaic.version = 11 : i64} {
  func.func @_wmsa_kernel(%arg0: memref<32x96xf32, #tpu.memory_space<vmem>>, %arg1: memref<97x224xf32, #tpu.memory_space<vmem>>, %arg2: memref<384x32xf32, #tpu.memory_space<vmem>>, %arg3: memref<32x384xf32, #tpu.memory_space<vmem>>, %arg4: memref<481x96xf32, #tpu.memory_space<vmem>>, %arg5: memref<32x96xf32, #tpu.memory_space<vmem>>) attributes {dimension_semantics = [], scalar_prefetch = 0 : i64, scratch_operands = 0 : i64, tpu.core_type = #tpu.core_type<tc>} {
    %c0 = arith.constant 0 : index
    %c0_0 = arith.constant 0 : index
    %0 = vector.load %arg0[%c0, %c0_0] : memref<32x96xf32, #tpu.memory_space<vmem>>, vector<32x96xf32>
    %c0_1 = arith.constant 0 : index
    %c0_2 = arith.constant 0 : index
    %1 = vector.load %arg1[%c0_1, %c0_2] : memref<97x224xf32, #tpu.memory_space<vmem>>, vector<96x224xf32>
    %cst = arith.constant dense<0.000000e+00> : vector<32x224xf32>
    %2 = tpu.matmul %0, %1, %cst {dimension_numbers = #tpu.dot_dimension_numbers<[1], [0], [0], [1], [0, 0, 1, 1], [], []>} : vector<32x96xf32>, vector<96x224xf32>, vector<32x224xf32> -> vector<32x224xf32>
    %c96 = arith.constant 96 : index
    %c0_3 = arith.constant 0 : index
    %3 = vector.load %arg1[%c96, %c0_3] : memref<97x224xf32, #tpu.memory_space<vmem>>, vector<1x224xf32>
    %4 = vector.broadcast %3 : vector<1x224xf32> to vector<32x224xf32>
    %5 = arith.addf %2, %4 : vector<32x224xf32>
    %6 = vector.extract_strided_slice %5 {offsets = [0, 0], sizes = [32, 32], strides = [1, 1]} : vector<32x224xf32> to vector<32x32xf32>
    %7 = vector.extract_strided_slice %5 {offsets = [0, 32], sizes = [32, 96], strides = [1, 1]} : vector<32x224xf32> to vector<32x96xf32>
    %8 = vector.extract_strided_slice %5 {offsets = [0, 128], sizes = [32, 96], strides = [1, 1]} : vector<32x224xf32> to vector<32x96xf32>
    %9 = vector.extract_strided_slice %7 {offsets = [0, 0], sizes = [32, 32], strides = [1, 1]} : vector<32x96xf32> to vector<32x32xf32>
    %10 = vector.extract_strided_slice %7 {offsets = [0, 32], sizes = [32, 32], strides = [1, 1]} : vector<32x96xf32> to vector<32x32xf32>
    %11 = vector.extract_strided_slice %7 {offsets = [0, 64], sizes = [32, 32], strides = [1, 1]} : vector<32x96xf32> to vector<32x32xf32>
    %12 = tpu.concatenate %9, %10, %11 in 0 : vector<32x32xf32>, vector<32x32xf32>, vector<32x32xf32> -> vector<96x32xf32>
    %13 = tpu.concatenate %12, %12, %12, %12 in 0 : vector<96x32xf32>, vector<96x32xf32>, vector<96x32xf32>, vector<96x32xf32> -> vector<384x32xf32>
    %c0_4 = arith.constant 0 : index
    %c0_5 = arith.constant 0 : index
    %14 = vector.load %arg2[%c0_4, %c0_5] : memref<384x32xf32, #tpu.memory_space<vmem>>, vector<384x32xf32>
    %15 = arith.mulf %13, %14 : vector<384x32xf32>
    %cst_6 = arith.constant dense<0.000000e+00> : vector<32x384xf32>
    %16 = tpu.matmul %6, %15, %cst_6 {dimension_numbers = #tpu.dot_dimension_numbers<[1], [1], [0], [0], [0, 0, 1, 0], [], []>} : vector<32x32xf32>, vector<384x32xf32>, vector<32x384xf32> -> vector<32x384xf32>
    %c0_7 = arith.constant 0 : index
    %c0_8 = arith.constant 0 : index
    %17 = vector.load %arg3[%c0_7, %c0_8] : memref<32x384xf32, #tpu.memory_space<vmem>>, vector<32x384xf32>
    %18 = arith.addf %16, %17 : vector<32x384xf32>
    %cst_9 = arith.constant dense<0xFF800000> : vector<32xf32>
    %19 = vector.multi_reduction <maximumf>, %18, %cst_9 [1] : vector<32x384xf32> to vector<32xf32>
    %20 = vector.shape_cast %19 : vector<32xf32> to vector<32x1xf32>
    %21 = vector.broadcast %20 : vector<32x1xf32> to vector<32x384xf32>
    %22 = arith.subf %18, %21 : vector<32x384xf32>
    %23 = math.exp %22 : vector<32x384xf32>
    %c0_10 = arith.constant 0 : index
    %c0_11 = arith.constant 0 : index
    %24 = vector.load %arg4[%c0_10, %c0_11] : memref<481x96xf32, #tpu.memory_space<vmem>>, vector<384x96xf32>
    %25 = tpu.concatenate %8, %8, %8, %8, %8, %8, %8, %8, %8, %8, %8, %8 in 0 : vector<32x96xf32>, vector<32x96xf32>, vector<32x96xf32>, vector<32x96xf32>, vector<32x96xf32>, vector<32x96xf32>, vector<32x96xf32>, vector<32x96xf32>, vector<32x96xf32>, vector<32x96xf32>, vector<32x96xf32>, vector<32x96xf32> -> vector<384x96xf32>
    %26 = arith.mulf %25, %24 : vector<384x96xf32>
    %cst_12 = arith.constant dense<0.000000e+00> : vector<32x96xf32>
    %27 = tpu.matmul %23, %26, %cst_12 {dimension_numbers = #tpu.dot_dimension_numbers<[1], [0], [0], [1], [0, 0, 1, 1], [], []>} : vector<32x384xf32>, vector<384x96xf32>, vector<32x96xf32> -> vector<32x96xf32>
    %cst_13 = arith.constant dense<0.000000e+00> : vector<32x96xf32>
    %28 = tpu.matmul %23, %24, %cst_13 {dimension_numbers = #tpu.dot_dimension_numbers<[1], [0], [0], [1], [0, 0, 1, 1], [], []>} : vector<32x384xf32>, vector<384x96xf32>, vector<32x96xf32> -> vector<32x96xf32>
    %29 = tpu.reciprocal %28 {approx = true} : vector<32x96xf32> -> vector<32x96xf32>
    %30 = arith.mulf %27, %29 : vector<32x96xf32>
    %c384 = arith.constant 384 : index
    %c0_14 = arith.constant 0 : index
    %31 = vector.load %arg4[%c384, %c0_14] : memref<481x96xf32, #tpu.memory_space<vmem>>, vector<96x96xf32>
    %cst_15 = arith.constant dense<0.000000e+00> : vector<32x96xf32>
    %32 = tpu.matmul %30, %31, %cst_15 {dimension_numbers = #tpu.dot_dimension_numbers<[1], [0], [0], [1], [0, 0, 1, 1], [], []>} : vector<32x96xf32>, vector<96x96xf32>, vector<32x96xf32> -> vector<32x96xf32>
    %c480 = arith.constant 480 : index
    %c0_16 = arith.constant 0 : index
    %33 = vector.load %arg4[%c480, %c0_16] : memref<481x96xf32, #tpu.memory_space<vmem>>, vector<1x96xf32>
    %34 = vector.broadcast %33 : vector<1x96xf32> to vector<32x96xf32>
    %35 = arith.addf %32, %34 : vector<32x96xf32>
    %c0_17 = arith.constant 0 : index
    %c0_18 = arith.constant 0 : index
    %36 = vector.load %arg5[%c0_17, %c0_18] : memref<32x96xf32, #tpu.memory_space<vmem>>, vector<32x96xf32>
    tpu.vector_store %arg5[%c0_17, %c0_18], %35 {strides = array<i32>} : memref<32x96xf32, #tpu.memory_space<vmem>>, vector<32x96xf32>,
    return
  }
}

</mosaic_0001>

<llo_original>
// kernel: window_attention_forward.1
$region0: #{window_attention_forward.1}
  #allocation0 [shape = 'u32[]', space=smem, size = 0x4, offset = 0x4, fixed_abs, tag = 'smem constant byte address 0x4 - core index']
  #allocation1 [shape = 'u32[144,128]{1,0:T(1,128)}', space=vmem, size = 0x12000, scoped, tag = 'internal scratch']
  %s0 = inlined_call_operand.vmem [shape: f32[32,96], index: 0, kind: input, shape index: {}]
  %s1 = inlined_call_operand.vmem [shape: f32[97,224], index: 1, kind: input, shape index: {}]
  %s2 = inlined_call_operand.vmem [shape: f32[384,32], index: 2, kind: input, shape index: {}]
  %s3 = inlined_call_operand.vmem [shape: f32[32,384], index: 3, kind: input, shape index: {}]
  %s4 = inlined_call_operand.vmem [shape: f32[481,96], index: 4, kind: input, shape index: {}]
  %s5 = inlined_call_operand.vmem [shape: f32[32,96], index: 5, kind: output, shape index: {}]
  %s6 = sld [smem:[#allocation0]]
  $region30: #{window_attention_forward.1} parent=0
    _
  %s8 = ssub.s32 1, %s6
  %s9 = scalar_select 0, %s8, %s6
  // Predicated region
  $region2: #{window_attention_forward.1} parent=0 // pred_check
    _
  $region3: #{window_attention_forward.1} parent=0 // pred_check_branch
    %11 = sbr.rel (0) target = $region5
  $region4: #{window_attention_forward.1} parent=0 // pred_region
    _
  $region5: #{window_attention_forward.1} parent=0 // pred_fallthru
    _
  // Predicated region
  $region6: #{window_attention_forward.1} parent=0 // pred_check
    _
  $region7: #{window_attention_forward.1} parent=0 // pred_check_branch
    %13 = sbr.rel (0) target = $region9
  $region8: #{window_attention_forward.1} parent=0 // pred_region
    _
  $region9: #{window_attention_forward.1} parent=0 // pred_fallthru
    _
  // Predicated region
  $region10: #{window_attention_forward.1} parent=0 // pred_check
    _
  $region11: #{window_attention_forward.1} parent=0 // pred_check_branch
    %15 = sbr.rel (0) target = $region13
  $region12: #{window_attention_forward.1} parent=0 // pred_region
    _
  $region13: #{window_attention_forward.1} parent=0 // pred_fallthru
    _
  // Predicated region
  $region14: #{window_attention_forward.1} parent=0 // pred_check
    _
  $region15: #{window_attention_forward.1} parent=0 // pred_check_branch
    %17 = sbr.rel (0) target = $region17
  $region16: #{window_attention_forward.1} parent=0 // pred_region
    _
  $region17: #{window_attention_forward.1} parent=0 // pred_fallthru
    _
  // Predicated region
  $region18: #{window_attention_forward.1} parent=0 // pred_check
    _
  $region19: #{window_attention_forward.1} parent=0 // pred_check_branch
    %19 = sbr.rel (0) target = $region21
  $region20: #{window_attention_forward.1} parent=0 // pred_region
    _
  $region21: #{window_attention_forward.1} parent=0 // pred_fallthru
    _
  %v20 = vld [vmem:[%s0] sm:$0xff]
  %v21 = vld [vmem:[%s0 + $0x8] sm:$0xff]
  %v22 = vld [vmem:[%s0 + $0x10] sm:$0xff]
  %v23 = vld [vmem:[%s0 + $0x18] sm:$0xff]
  %v24 = vld [vmem:[%s1] sm:$0xff]
  %v25 = vld [vmem:[%s1 + $0x8] sm:$0xff]
  %v26 = vld [vmem:[%s1 + $0x10] sm:$0xff]
  %v27 = vld [vmem:[%s1 + $0x18] sm:$0xff]
  %v28 = vld [vmem:[%s1 + $0x20] sm:$0xff]
  %v29 = vld [vmem:[%s1 + $0x28] sm:$0xff]
  %v30 = vld [vmem:[%s1 + $0x30] sm:$0xff]
  %v31 = vld [vmem:[%s1 + $0x38] sm:$0xff]
  %v32 = vld [vmem:[%s1 + $0x40] sm:$0xff]
  %v33 = vld [vmem:[%s1 + $0x48] sm:$0xff]
  %v34 = vld [vmem:[%s1 + $0x50] sm:$0xff]
  %v35 = vld [vmem:[%s1 + $0x58] sm:$0xff]
  %v36 = vld [vmem:[%s1 + $0x60] sm:$0xff]
  %v37 = vld [vmem:[%s1 + $0x68] sm:$0xff]
  %v38 = vld [vmem:[%s1 + $0x70] sm:$0xff]
  %v39 = vld [vmem:[%s1 + $0x78] sm:$0xff]
  %v40 = vld [vmem:[%s1 + $0x80] sm:$0xff]
  %v41 = vld [vmem:[%s1 + $0x88] sm:$0xff]
  %v42 = vld [vmem:[%s1 + $0x90] sm:$0xff]
  %v43 = vld [vmem:[%s1 + $0x98] sm:$0xff]
  %v44 = vld [vmem:[%s1 + $0xa0] sm:$0xff]
  %v45 = vld [vmem:[%s1 + $0xa8] sm:$0xff]
  %v46 = vld [vmem:[%s1 + $0xb0] sm:$0xff]
  %v47 = vld [vmem:[%s1 + $0xb8] sm:$0xff]
  %s48 = scalar_lea.vmem %s1, 192
  %v49 = vld [vmem:[%s48] ss:$8 sm:$0x3]
  %v51 = vlaneseq
  %v52 = vshrl.u32 %v51, 7
  %v53 = vsub.s32 0, %v52
  %v54 = vrot.slane %v49, %v53
  %v55 = vlaneseq
  %v56 = vshrl.u32 %v55, 7
  %v57 = vsub.s32 1, %v56
  %v58 = vrot.slane %v49, %v57
  %vm61 = vcmask 785408
  %v63 = vsel %vm61, %v20, 0
  %v66 = vsel %vm61, %v21, 0
  %v69 = vsel %vm61, %v22, 0
  %v72 = vsel %vm61, %v23, 0
  %74 = vmatprep.subr.mxu0 0.0
  %75 = vmatpush1.msra.mxu0 0.0
  %76 = vmatprep.subr.mxu0 0.0
  %77 = vmatpush1.msra.mxu0 0.0
  %78 = vmatprep.subr.mxu0 0.0
  %79 = vmatpush1.msra.mxu0 0.0
  %80 = vmatprep.subr.mxu0 0.0
  %81 = vmatpush1.msra.mxu0 0.0
  %82 = vmatprep.subr.mxu0 %v47
  %83 = vmatpush1.msra.mxu0 %v46
  %84 = vmatprep.subr.mxu0 %v45
  %85 = vmatpush1.msra.mxu0 %v44
  %86 = vmatprep.subr.mxu0 %v43
  %87 = vmatpush1.msra.mxu0 %v42
  %88 = vmatprep.subr.mxu0 %v41
  %89 = vmatpush1.msra.mxu0 %v40
  %90 = vmatprep.subr.mxu0 %v39
  %91 = vmatpush1.msra.mxu0 %v38
  %92 = vmatprep.subr.mxu0 %v37
  %93 = vmatpush1.msra.mxu0 %v36
  %94 = vmatprep.subr.mxu0 %v35
  %95 = vmatpush1.msra.mxu0 %v34
  %96 = vmatprep.subr.mxu0 %v33
  %97 = vmatpush1.msra.mxu0 %v32
  %98 = vmatprep.subr.mxu0 %v31
  %99 = vmatpush1.msra.mxu0 %v30
  %100 = vmatprep.subr.mxu0 %v29
  %101 = vmatpush1.msra.mxu0 %v28
  %102 = vmatprep.subr.mxu0 %v27
  %103 = vmatpush1.msra.mxu0 %v26
  %104 = vmatprep.subr.mxu0 %v25
  %105 = vmatpush1.msra.mxu0 %v24
  %106 = vmatprep.subr.mxu0 0.0
  %107 = vmatpush2.msra.mxu0 0.0
  %108 = vmatprep.subr.mxu0 0.0
  %109 = vmatpush2.msra.mxu0 0.0
  %110 = vmatprep.subr.mxu0 0.0
  %111 = vmatpush2.msra.mxu0 0.0
  %112 = vmatprep.subr.mxu0 0.0
  %113 = vmatpush2.msra.mxu0 0.0
  %114 = vmatprep.subr.mxu0 0.0
  %115 = vmatpush2.msra.mxu0 0.0
  %116 = vmatprep.subr.mxu0 0.0
  %117 = vmatpush2.msra.mxu0 0.0
  %118 = vmatprep.subr.mxu0 0.0
  %119 = vmatpush2.msra.mxu0 0.0
  %120 = vmatprep.subr.mxu0 0.0
  %121 = vmatpush2.msra.mxu0 0.0
  %122 = vmatprep.subr.mxu0 0.0
  %123 = vmatpush2.msra.mxu0 0.0
  %124 = vmatprep.subr.mxu0 0.0
  %125 = vmatpush2.msra.mxu0 0.0
  %126 = vmatprep.subr.mxu0 0.0
  %127 = vmatpush2.msra.mxu0 0.0
  %128 = vmatprep.subr.mxu0 0.0
  %129 = vmatpush2.msra.mxu0 0.0
  %130 = vmatprep.subr.mxu0 0.0
  %131 = vmatpush2.msra.mxu0 0.0
  %132 = vmatprep.subr.mxu0 0.0
  %133 = vmatpush2.msra.mxu0 0.0
  %134 = vmatprep.subr.mxu0 0.0
  %135 = vmatpush2.msra.mxu0 0.0
  %136 = vmatprep.subr.mxu0 0.0
  %137 = vmatpush2.msra.mxu0 0.0
  %138 = vmatprep.mubr.f32.mxu0 0.0
  %139 = vmatmul.mubr.f32.gmra.mxu0 %v63
  %v140 = vpop.f32.mrf.mxu0
  %v141 = vadd.f32 %v54, %v140
  %v142 = vpop.f32.mrf.mxu0
  %v143 = vadd.f32 %v58, %v142
  %144 = vmatprep.mubr.f32.mxu0 0.0
  %145 = vmatmul.mubr.f32.gmra.mxu0 %v66
  %v146 = vpop.f32.mrf.mxu0
  %v147 = vadd.f32 %v54, %v146
  %v148 = vpop.f32.mrf.mxu0
  %v149 = vadd.f32 %v58, %v148
  %150 = vmatprep.mubr.f32.mxu0 0.0
  %151 = vmatmul.mubr.f32.gmra.mxu0 %v69
  %v152 = vpop.f32.mrf.mxu0
  %v153 = vadd.f32 %v54, %v152
  %v154 = vpop.f32.mrf.mxu0
  %v155 = vadd.f32 %v58, %v154
  %156 = vmatprep.mubr.f32.mxu0 0.0
  %157 = vmatmul.mubr.f32.gmra.mxu0 %v72
  %v158 = vpop.f32.mrf.mxu0
  %v159 = vadd.f32 %v54, %v158
  %v160 = vpop.f32.mrf.mxu0
  %v161 = vadd.f32 %v58, %v160
  %162 = vdwg.mxu0
  %167 = vrot.lane.b32.xlu0 %v141, 96
  %v168 = vpop.permute.xlu0 %167
  %169 = vrot.lane.b32.xlu0 %v147, 96
  %v170 = vpop.permute.xlu0 %169
  %171 = vrot.lane.b32.xlu0 %v153, 96
  %v172 = vpop.permute.xlu0 %171
  %173 = vrot.lane.b32.xlu0 %v159, 96
  %v174 = vpop.permute.xlu0 %173
  %179 = vrot.lane.b32.xlu0 %v141, 64
  %v180 = vpop.permute.xlu0 %179
  %181 = vrot.lane.b32.xlu0 %v147, 64
  %v182 = vpop.permute.xlu0 %181
  %183 = vrot.lane.b32.xlu0 %v153, 64
  %v184 = vpop.permute.xlu0 %183
  %185 = vrot.lane.b32.xlu0 %v159, 64
  %v186 = vpop.permute.xlu0 %185
  %v191 = vld [vmem:[%s2] sm:$0xff]
  %v192 = vld [vmem:[%s2 + $0x8] sm:$0xff]
  %v193 = vld [vmem:[%s2 + $0x10] sm:$0xff]
  %v194 = vld [vmem:[%s2 + $0x18] sm:$0xff]
  %v195 = vld [vmem:[%s2 + $0x20] sm:$0xff]
  %v196 = vld [vmem:[%s2 + $0x28] sm:$0xff]
  %v197 = vld [vmem:[%s2 + $0x30] sm:$0xff]
  %v198 = vld [vmem:[%s2 + $0x38] sm:$0xff]
  %v199 = vld [vmem:[%s2 + $0x40] sm:$0xff]
  %v200 = vld [vmem:[%s2 + $0x48] sm:$0xff]
  %v201 = vld [vmem:[%s2 + $0x50] sm:$0xff]
  %v202 = vld [vmem:[%s2 + $0x58] sm:$0xff]
  %v203 = vld [vmem:[%s2 + $0x60] sm:$0xff]
  %v204 = vld [vmem:[%s2 + $0x68] sm:$0xff]
  %v205 = vld [vmem:[%s2 + $0x70] sm:$0xff]
  %v206 = vld [vmem:[%s2 + $0x78] sm:$0xff]
  %v207 = vld [vmem:[%s2 + $0x80] sm:$0xff]
  %v208 = vld [vmem:[%s2 + $0x88] sm:$0xff]
  %v209 = vld [vmem:[%s2 + $0x90] sm:$0xff]
  %v210 = vld [vmem:[%s2 + $0x98] sm:$0xff]
  %v211 = vld [vmem:[%s2 + $0xa0] sm:$0xff]
  %v212 = vld [vmem:[%s2 + $0xa8] sm:$0xff]
  %v213 = vld [vmem:[%s2 + $0xb0] sm:$0xff]
  %v214 = vld [vmem:[%s2 + $0xb8] sm:$0xff]
  %v215 = vld [vmem:[%s2 + $0xc0] sm:$0xff]
  %v216 = vld [vmem:[%s2 + $0xc8] sm:$0xff]
  %v217 = vld [vmem:[%s2 + $0xd0] sm:$0xff]
  %v218 = vld [vmem:[%s2 + $0xd8] sm:$0xff]
  %v219 = vld [vmem:[%s2 + $0xe0] sm:$0xff]
  %v220 = vld [vmem:[%s2 + $0xe8] sm:$0xff]
  %v221 = vld [vmem:[%s2 + $0xf0] sm:$0xff]
  %v222 = vld [vmem:[%s2 + $0xf8] sm:$0xff]
  %v223 = vld [vmem:[%s2 + $0x100] sm:$0xff]
  %v224 = vld [vmem:[%s2 + $0x108] sm:$0xff]
  %v225 = vld [vmem:[%s2 + $0x110] sm:$0xff]
  %v226 = vld [vmem:[%s2 + $0x118] sm:$0xff]
  %v227 = vld [vmem:[%s2 + $0x120] sm:$0xff]
  %v228 = vld [vmem:[%s2 + $0x128] sm:$0xff]
  %v229 = vld [vmem:[%s2 + $0x130] sm:$0xff]
  %v230 = vld [vmem:[%s2 + $0x138] sm:$0xff]
  %v231 = vld [vmem:[%s2 + $0x140] sm:$0xff]
  %v232 = vld [vmem:[%s2 + $0x148] sm:$0xff]
  %v233 = vld [vmem:[%s2 + $0x150] sm:$0xff]
  %v234 = vld [vmem:[%s2 + $0x158] sm:$0xff]
  %v235 = vld [vmem:[%s2 + $0x160] sm:$0xff]
  %v236 = vld [vmem:[%s2 + $0x168] sm:$0xff]
  %v237 = vld [vmem:[%s2 + $0x170] sm:$0xff]
  %v238 = vld [vmem:[%s2 + $0x178] sm:$0xff]
  %287 = vrot.lane.b32.xlu0 %v191, 32
  %v288 = vpop.permute.xlu0 %287
  %289 = vrot.lane.b32.xlu0 %v192, 32
  %v290 = vpop.permute.xlu0 %289
  %291 = vrot.lane.b32.xlu0 %v193, 32
  %v292 = vpop.permute.xlu0 %291
  %293 = vrot.lane.b32.xlu0 %v194, 32
  %v294 = vpop.permute.xlu0 %293
  %295 = vrot.lane.b32.xlu0 %v195, 32
  %v296 = vpop.permute.xlu0 %295
  %297 = vrot.lane.b32.xlu0 %v196, 32
  %v298 = vpop.permute.xlu0 %297
  %299 = vrot.lane.b32.xlu0 %v197, 32
  %v300 = vpop.permute.xlu0 %299
  %301 = vrot.lane.b32.xlu0 %v198, 32
  %v302 = vpop.permute.xlu0 %301
  %303 = vrot.lane.b32.xlu0 %v199, 32
  %v304 = vpop.permute.xlu0 %303
  %305 = vrot.lane.b32.xlu0 %v200, 32
  %v306 = vpop.permute.xlu0 %305
  %307 = vrot.lane.b32.xlu0 %v201, 32
  %v308 = vpop.permute.xlu0 %307
  %309 = vrot.lane.b32.xlu0 %v202, 32
  %v310 = vpop.permute.xlu0 %309
  %311 = vrot.lane.b32.xlu0 %v203, 32
  %v312 = vpop.permute.xlu0 %311
  %313 = vrot.lane.b32.xlu0 %v204, 32
  %v314 = vpop.permute.xlu0 %313
  %315 = vrot.lane.b32.xlu0 %v205, 32
  %v316 = vpop.permute.xlu0 %315
  %317 = vrot.lane.b32.xlu0 %v206, 32
  %v318 = vpop.permute.xlu0 %317
  %319 = vrot.lane.b32.xlu0 %v207, 32
  %v320 = vpop.permute.xlu0 %319
  %321 = vrot.lane.b32.xlu0 %v208, 32
  %v322 = vpop.permute.xlu0 %321
  %323 = vrot.lane.b32.xlu0 %v209, 32
  %v324 = vpop.permute.xlu0 %323
  %325 = vrot.lane.b32.xlu0 %v210, 32
  %v326 = vpop.permute.xlu0 %325
  %327 = vrot.lane.b32.xlu0 %v211, 32
  %v328 = vpop.permute.xlu0 %327
  %329 = vrot.lane.b32.xlu0 %v212, 32
  %v330 = vpop.permute.xlu0 %329
  %331 = vrot.lane.b32.xlu0 %v213, 32
  %v332 = vpop.permute.xlu0 %331
  %333 = vrot.lane.b32.xlu0 %v214, 32
  %v334 = vpop.permute.xlu0 %333
  %335 = vrot.lane.b32.xlu0 %v215, 32
  %v336 = vpop.permute.xlu0 %335
  %337 = vrot.lane.b32.xlu0 %v216, 32
  %v338 = vpop.permute.xlu0 %337
  %339 = vrot.lane.b32.xlu0 %v217, 32
  %v340 = vpop.permute.xlu0 %339
  %341 = vrot.lane.b32.xlu0 %v218, 32
  %v342 = vpop.permute.xlu0 %341
  %343 = vrot.lane.b32.xlu0 %v219, 32
  %v344 = vpop.permute.xlu0 %343
  %345 = vrot.lane.b32.xlu0 %v220, 32
  %v346 = vpop.permute.xlu0 %345
  %347 = vrot.lane.b32.xlu0 %v221, 32
  %v348 = vpop.permute.xlu0 %347
  %349 = vrot.lane.b32.xlu0 %v222, 32
  %v350 = vpop.permute.xlu0 %349
  %351 = vrot.lane.b32.xlu0 %v223, 32
  %v352 = vpop.permute.xlu0 %351
  %353 = vrot.lane.b32.xlu0 %v224, 32
  %v354 = vpop.permute.xlu0 %353
  %355 = vrot.lane.b32.xlu0 %v225, 32
  %v356 = vpop.permute.xlu0 %355
  %357 = vrot.lane.b32.xlu0 %v226, 32
  %v358 = vpop.permute.xlu0 %357
  %359 = vrot.lane.b32.xlu0 %v227, 32
  %v360 = vpop.permute.xlu0 %359
  %361 = vrot.lane.b32.xlu0 %v228, 32
  %v362 = vpop.permute.xlu0 %361
  %363 = vrot.lane.b32.xlu0 %v229, 32
  %v364 = vpop.permute.xlu0 %363
  %365 = vrot.lane.b32.xlu0 %v230, 32
  %v366 = vpop.permute.xlu0 %365
  %367 = vrot.lane.b32.xlu0 %v231, 32
  %v368 = vpop.permute.xlu0 %367
  %369 = vrot.lane.b32.xlu0 %v232, 32
  %v370 = vpop.permute.xlu0 %369
  %371 = vrot.lane.b32.xlu0 %v233, 32
  %v372 = vpop.permute.xlu0 %371
  %373 = vrot.lane.b32.xlu0 %v234, 32
  %v374 = vpop.permute.xlu0 %373
  %375 = vrot.lane.b32.xlu0 %v235, 32
  %v376 = vpop.permute.xlu0 %375
  %377 = vrot.lane.b32.xlu0 %v236, 32
  %v378 = vpop.permute.xlu0 %377
  %379 = vrot.lane.b32.xlu0 %v237, 32
  %v380 = vpop.permute.xlu0 %379
  %381 = vrot.lane.b32.xlu0 %v238, 32
  %v382 = vpop.permute.xlu0 %381
  %v431 = vmul.f32 %v141, %v288
  %v432 = vmul.f32 %v147, %v290
  %v433 = vmul.f32 %v153, %v292
  %v434 = vmul.f32 %v159, %v294
  %v435 = vmul.f32 %v168, %v296
  %v436 = vmul.f32 %v170, %v298
  %v437 = vmul.f32 %v172, %v300
  %v438 = vmul.f32 %v174, %v302
  %v439 = vmul.f32 %v180, %v304
  %v440 = vmul.f32 %v182, %v306
  %v441 = vmul.f32 %v184, %v308
  %v442 = vmul.f32 %v186, %v310
  %v443 = vmul.f32 %v141, %v312
  %v444 = vmul.f32 %v147, %v314
  %v445 = vmul.f32 %v153, %v316
  %v446 = vmul.f32 %v159, %v318
  %v447 = vmul.f32 %v168, %v320
  %v448 = vmul.f32 %v170, %v322
  %v449 = vmul.f32 %v172, %v324
  %v450 = vmul.f32 %v174, %v326
  %v451 = vmul.f32 %v180, %v328
  %v452 = vmul.f32 %v182, %v330
  %v453 = vmul.f32 %v184, %v332
  %v454 = vmul.f32 %v186, %v334
  %v455 = vmul.f32 %v141, %v336
  %v456 = vmul.f32 %v147, %v338
  %v457 = vmul.f32 %v153, %v340
  %v458 = vmul.f32 %v159, %v342
  %v459 = vmul.f32 %v168, %v344
  %v460 = vmul.f32 %v170, %v346
  %v461 = vmul.f32 %v172, %v348
  %v462 = vmul.f32 %v174, %v350
  %v463 = vmul.f32 %v180, %v352
  %v464 = vmul.f32 %v182, %v354
  %v465 = vmul.f32 %v184, %v356
  %v466 = vmul.f32 %v186, %v358
  %v467 = vmul.f32 %v141, %v360
  %v468 = vmul.f32 %v147, %v362
  %v469 = vmul.f32 %v153, %v364
  %v470 = vmul.f32 %v159, %v366
  %v471 = vmul.f32 %v168, %v368
  %v472 = vmul.f32 %v170, %v370
  %v473 = vmul.f32 %v172, %v372
  %v474 = vmul.f32 %v174, %v374
  %v475 = vmul.f32 %v180, %v376
  %v476 = vmul.f32 %v182, %v378
  %v477 = vmul.f32 %v184, %v380
  %v478 = vmul.f32 %v186, %v382
  %v479 = vld [vmem:[%s3] sm:$0xff]
  %v480 = vld [vmem:[%s3 + $0x8] sm:$0xff]
  %v481 = vld [vmem:[%s3 + $0x10] sm:$0xff]
  %v482 = vld [vmem:[%s3 + $0x18] sm:$0xff]
  %v483 = vld [vmem:[%s3 + $0x20] sm:$0xff]
  %v484 = vld [vmem:[%s3 + $0x28] sm:$0xff]
  %v485 = vld [vmem:[%s3 + $0x30] sm:$0xff]
  %v486 = vld [vmem:[%s3 + $0x38] sm:$0xff]
  %v487 = vld [vmem:[%s3 + $0x40] sm:$0xff]
  %v488 = vld [vmem:[%s3 + $0x48] sm:$0xff]
  %v489 = vld [vmem:[%s3 + $0x50] sm:$0xff]
  %v490 = vld [vmem:[%s3 + $0x58] sm:$0xff]
  %539 = vrot.lane.b32.xlu0 %v431, 96
  %v540 = vpop.permute.xlu0 %539
  %541 = vrot.lane.b32.xlu0 %v432, 96
  %v542 = vpop.permute.xlu0 %541
  %543 = vrot.lane.b32.xlu0 %v433, 96
  %v544 = vpop.permute.xlu0 %543
  %545 = vrot.lane.b32.xlu0 %v434, 96
  %v546 = vpop.permute.xlu0 %545
  %547 = vrot.lane.b32.xlu0 %v435, 96
  %v548 = vpop.permute.xlu0 %547
  %549 = vrot.lane.b32.xlu0 %v436, 96
  %v550 = vpop.permute.xlu0 %549
  %551 = vrot.lane.b32.xlu0 %v437, 96
  %v552 = vpop.permute.xlu0 %551
  %553 = vrot.lane.b32.xlu0 %v438, 96
  %v554 = vpop.permute.xlu0 %553
  %555 = vrot.lane.b32.xlu0 %v439, 96
  %v556 = vpop.permute.xlu0 %555
  %557 = vrot.lane.b32.xlu0 %v440, 96
  %v558 = vpop.permute.xlu0 %557
  %559 = vrot.lane.b32.xlu0 %v441, 96
  %v560 = vpop.permute.xlu0 %559
  %561 = vrot.lane.b32.xlu0 %v442, 96
  %v562 = vpop.permute.xlu0 %561
  %563 = vrot.lane.b32.xlu0 %v443, 96
  %v564 = vpop.permute.xlu0 %563
  %565 = vrot.lane.b32.xlu0 %v444, 96
  %v566 = vpop.permute.xlu0 %565
  %567 = vrot.lane.b32.xlu0 %v445, 96
  %v568 = vpop.permute.xlu0 %567
  %569 = vrot.lane.b32.xlu0 %v446, 96
  %v570 = vpop.permute.xlu0 %569
  %571 = vrot.lane.b32.xlu0 %v447, 96
  %v572 = vpop.permute.xlu0 %571
  %573 = vrot.lane.b32.xlu0 %v448, 96
  %v574 = vpop.permute.xlu0 %573
  %575 = vrot.lane.b32.xlu0 %v449, 96
  %v576 = vpop.permute.xlu0 %575
  %577 = vrot.lane.b32.xlu0 %v450, 96
  %v578 = vpop.permute.xlu0 %577
  %579 = vrot.lane.b32.xlu0 %v451, 96
  %v580 = vpop.permute.xlu0 %579
  %581 = vrot.lane.b32.xlu0 %v452, 96
  %v582 = vpop.permute.xlu0 %581
  %583 = vrot.lane.b32.xlu0 %v453, 96
  %v584 = vpop.permute.xlu0 %583
  %585 = vrot.lane.b32.xlu0 %v454, 96
  %v586 = vpop.permute.xlu0 %585
  %587 = vrot.lane.b32.xlu0 %v455, 96
  %v588 = vpop.permute.xlu0 %587
  %589 = vrot.lane.b32.xlu0 %v456, 96
  %v590 = vpop.permute.xlu0 %589
  %591 = vrot.lane.b32.xlu0 %v457, 96
  %v592 = vpop.permute.xlu0 %591
  %593 = vrot.lane.b32.xlu0 %v458, 96
  %v594 = vpop.permute.xlu0 %593
  %595 = vrot.lane.b32.xlu0 %v459, 96
  %v596 = vpop.permute.xlu0 %595
  %597 = vrot.lane.b32.xlu0 %v460, 96
  %v598 = vpop.permute.xlu0 %597
  %599 = vrot.lane.b32.xlu0 %v461, 96
  %v600 = vpop.permute.xlu0 %599
  %601 = vrot.lane.b32.xlu0 %v462, 96
  %v602 = vpop.permute.xlu0 %601
  %603 = vrot.lane.b32.xlu0 %v463, 96
  %v604 = vpop.permute.xlu0 %603
  %605 = vrot.lane.b32.xlu0 %v464, 96
  %v606 = vpop.permute.xlu0 %605
  %607 = vrot.lane.b32.xlu0 %v465, 96
  %v608 = vpop.permute.xlu0 %607
  %609 = vrot.lane.b32.xlu0 %v466, 96
  %v610 = vpop.permute.xlu0 %609
  %611 = vrot.lane.b32.xlu0 %v467, 96
  %v612 = vpop.permute.xlu0 %611
  %613 = vrot.lane.b32.xlu0 %v468, 96
  %v614 = vpop.permute.xlu0 %613
  %615 = vrot.lane.b32.xlu0 %v469, 96
  %v616 = vpop.permute.xlu0 %615
  %617 = vrot.lane.b32.xlu0 %v470, 96
  %v618 = vpop.permute.xlu0 %617
  %619 = vrot.lane.b32.xlu0 %v471, 96
  %v620 = vpop.permute.xlu0 %619
  %621 = vrot.lane.b32.xlu0 %v472, 96
  %v622 = vpop.permute.xlu0 %621
  %623 = vrot.lane.b32.xlu0 %v473, 96
  %v624 = vpop.permute.xlu0 %623
  %625 = vrot.lane.b32.xlu0 %v474, 96
  %v626 = vpop.permute.xlu0 %625
  %627 = vrot.lane.b32.xlu0 %v475, 96
  %v628 = vpop.permute.xlu0 %627
  %629 = vrot.lane.b32.xlu0 %v476, 96
  %v630 = vpop.permute.xlu0 %629
  %631 = vrot.lane.b32.xlu0 %v477, 96
  %v632 = vpop.permute.xlu0 %631
  %633 = vrot.lane.b32.xlu0 %v478, 96
  %v634 = vpop.permute.xlu0 %633
  %vm635 = vcmask 261120
  %v636 = vsel %vm635, %v141, 0
  %v638 = vsel %vm635, %v147, 0
  %v640 = vsel %vm635, %v153, 0
  %v642 = vsel %vm635, %v159, 0
  %v644 = vsel %vm635, %v540, 0
  %v646 = vsel %vm635, %v542, 0
  %v648 = vsel %vm635, %v544, 0
  %v650 = vsel %vm635, %v546, 0
  %v652 = vsel %vm635, %v548, 0
  %v654 = vsel %vm635, %v550, 0
  %v656 = vsel %vm635, %v552, 0
  %v658 = vsel %vm635, %v554, 0
  %v660 = vsel %vm635, %v556, 0
  %v662 = vsel %vm635, %v558, 0
  %v664 = vsel %vm635, %v560, 0
  %v666 = vsel %vm635, %v562, 0
  %v668 = vsel %vm635, %v564, 0
  %v670 = vsel %vm635, %v566, 0
  %v672 = vsel %vm635, %v568, 0
  %v674 = vsel %vm635, %v570, 0
  %v676 = vsel %vm635, %v572, 0
  %v678 = vsel %vm635, %v574, 0
  %v680 = vsel %vm635, %v576, 0
  %v682 = vsel %vm635, %v578, 0
  %v684 = vsel %vm635, %v580, 0
  %v686 = vsel %vm635, %v582, 0
  %v688 = vsel %vm635, %v584, 0
  %v690 = vsel %vm635, %v586, 0
  %v692 = vsel %vm635, %v588, 0
  %v694 = vsel %vm635, %v590, 0
  %v696 = vsel %vm635, %v592, 0
  %v698 = vsel %vm635, %v594, 0
  %v700 = vsel %vm635, %v596, 0
  %v702 = vsel %vm635, %v598, 0
  %v704 = vsel %vm635, %v600, 0
  %v706 = vsel %vm635, %v602, 0
  %v708 = vsel %vm635, %v604, 0
  %v710 = vsel %vm635, %v606, 0
  %v712 = vsel %vm635, %v608, 0
  %v714 = vsel %vm635, %v610, 0
  %v716 = vsel %vm635, %v612, 0
  %v718 = vsel %vm635, %v614, 0
  %v720 = vsel %vm635, %v616, 0
  %v722 = vsel %vm635, %v618, 0
  %v724 = vsel %vm635, %v620, 0
  %v726 = vsel %vm635, %v622, 0
  %v728 = vsel %vm635, %v624, 0
  %v730 = vsel %vm635, %v626, 0
  %v732 = vsel %vm635, %v628, 0
  %v734 = vsel %vm635, %v630, 0
  %v736 = vsel %vm635, %v632, 0
  %v738 = vsel %vm635, %v634, 0
  %740 = vmatprep.subr.mxu0 0.0
  %741 = vmatpush1.xpose.msra.mxu0 %v674
  %742 = vmatprep.subr.mxu0 0.0
  %743 = vmatpush1.xpose.msra.mxu0 %v672
  %744 = vmatprep.subr.mxu0 0.0
  %745 = vmatpush1.xpose.msra.mxu0 %v670
  %746 = vmatprep.subr.mxu0 0.0
  %747 = vmatpush1.xpose.msra.mxu0 %v668
  %748 = vmatprep.subr.mxu0 0.0
  %749 = vmatpush1.xpose.msra.mxu0 %v666
  %750 = vmatprep.subr.mxu0 0.0
  %751 = vmatpush1.xpose.msra.mxu0 %v664
  %752 = vmatprep.subr.mxu0 0.0
  %753 = vmatpush1.xpose.msra.mxu0 %v662
  %754 = vmatprep.subr.mxu0 0.0
  %755 = vmatpush1.xpose.msra.mxu0 %v660
  %756 = vmatprep.subr.mxu0 0.0
  %757 = vmatpush1.xpose.msra.mxu0 %v658
  %758 = vmatprep.subr.mxu0 0.0
  %759 = vmatpush1.xpose.msra.mxu0 %v656
  %760 = vmatprep.subr.mxu0 0.0
  %761 = vmatpush1.xpose.msra.mxu0 %v654
  %762 = vmatprep.subr.mxu0 0.0
  %763 = vmatpush1.xpose.msra.mxu0 %v652
  %764 = vmatprep.subr.mxu0 0.0
  %765 = vmatpush1.xpose.msra.mxu0 %v650
  %766 = vmatprep.subr.mxu0 0.0
  %767 = vmatpush1.xpose.msra.mxu0 %v648
  %768 = vmatprep.subr.mxu0 0.0
  %769 = vmatpush1.xpose.msra.mxu0 %v646
  %770 = vmatprep.subr.mxu0 0.0
  %771 = vmatpush1.xpose.msra.mxu0 %v644
  %772 = vmatprep.subr.mxu0 0.0
  %773 = vmatpush2.xpose.msra.mxu0 %v706
  %774 = vmatprep.subr.mxu0 0.0
  %775 = vmatpush2.xpose.msra.mxu0 %v704
  %776 = vmatprep.subr.mxu0 0.0
  %777 = vmatpush2.xpose.msra.mxu0 %v702
  %778 = vmatprep.subr.mxu0 0.0
  %779 = vmatpush2.xpose.msra.mxu0 %v700
  %780 = vmatprep.subr.mxu0 0.0
  %781 = vmatpush2.xpose.msra.mxu0 %v698
  %782 = vmatprep.subr.mxu0 0.0
  %783 = vmatpush2.xpose.msra.mxu0 %v696
  %784 = vmatprep.subr.mxu0 0.0
  %785 = vmatpush2.xpose.msra.mxu0 %v694
  %786 = vmatprep.subr.mxu0 0.0
  %787 = vmatpush2.xpose.msra.mxu0 %v692
  %788 = vmatprep.subr.mxu0 0.0
  %789 = vmatpush2.xpose.msra.mxu0 %v690
  %790 = vmatprep.subr.mxu0 0.0
  %791 = vmatpush2.xpose.msra.mxu0 %v688
  %792 = vmatprep.subr.mxu0 0.0
  %793 = vmatpush2.xpose.msra.mxu0 %v686
  %794 = vmatprep.subr.mxu0 0.0
  %795 = vmatpush2.xpose.msra.mxu0 %v684
  %796 = vmatprep.subr.mxu0 0.0
  %797 = vmatpush2.xpose.msra.mxu0 %v682
  %798 = vmatprep.subr.mxu0 0.0
  %799 = vmatpush2.xpose.msra.mxu0 %v680
  %800 = vmatprep.subr.mxu0 0.0
  %801 = vmatpush2.xpose.msra.mxu0 %v678
  %802 = vmatprep.subr.mxu0 0.0
  %803 = vmatpush2.xpose.msra.mxu0 %v676
  %804 = vmatprep.mubr.f32.mxu0 0.0
  %805 = vmatmul.mubr.f32.gmra.mxu0 %v636
  %v806 = vpop.f32.mrf.mxu0
  %v807 = vadd.f32 %v479, %v806
  %v808 = vpop.f32.mrf.mxu0
  %v809 = vadd.f32 %v480, %v808
  %810 = vmatprep.mubr.f32.mxu0 0.0
  %811 = vmatmul.mubr.f32.gmra.mxu0 %v638
  %v812 = vpop.f32.mrf.mxu0
  %v813 = vadd.f32 %v482, %v812
  %v814 = vpop.f32.mrf.mxu0
  %v815 = vadd.f32 %v483, %v814
  %816 = vmatprep.mubr.f32.mxu0 0.0
  %817 = vmatmul.mubr.f32.gmra.mxu0 %v640
  %v818 = vpop.f32.mrf.mxu0
  %v819 = vadd.f32 %v485, %v818
  %v820 = vpop.f32.mrf.mxu0
  %v821 = vadd.f32 %v486, %v820
  %822 = vmatprep.mubr.f32.mxu0 0.0
  %823 = vmatmul.mubr.f32.gmra.mxu0 %v642
  %v824 = vpop.f32.mrf.mxu0
  %v825 = vadd.f32 %v488, %v824
  %v826 = vpop.f32.mrf.mxu0
  %v827 = vadd.f32 %v489, %v826
  %828 = vdwg.mxu0
  %829 = vmatprep.subr.mxu0 0.0
  %830 = vmatpush1.xpose.msra.mxu0 %v738
  %831 = vmatprep.subr.mxu0 0.0
  %832 = vmatpush1.xpose.msra.mxu0 %v736
  %833 = vmatprep.subr.mxu0 0.0
  %834 = vmatpush1.xpose.msra.mxu0 %v734
  %835 = vmatprep.subr.mxu0 0.0
  %836 = vmatpush1.xpose.msra.mxu0 %v732
  %837 = vmatprep.subr.mxu0 0.0
  %838 = vmatpush1.xpose.msra.mxu0 %v730
  %839 = vmatprep.subr.mxu0 0.0
  %840 = vmatpush1.xpose.msra.mxu0 %v728
  %841 = vmatprep.subr.mxu0 0.0
  %842 = vmatpush1.xpose.msra.mxu0 %v726
  %843 = vmatprep.subr.mxu0 0.0
  %844 = vmatpush1.xpose.msra.mxu0 %v724
  %845 = vmatprep.subr.mxu0 0.0
  %846 = vmatpush1.xpose.msra.mxu0 %v722
  %847 = vmatprep.subr.mxu0 0.0
  %848 = vmatpush1.xpose.msra.mxu0 %v720
  %849 = vmatprep.subr.mxu0 0.0
  %850 = vmatpush1.xpose.msra.mxu0 %v718
  %851 = vmatprep.subr.mxu0 0.0
  %852 = vmatpush1.xpose.msra.mxu0 %v716
  %853 = vmatprep.subr.mxu0 0.0
  %854 = vmatpush1.xpose.msra.mxu0 %v714
  %855 = vmatprep.subr.mxu0 0.0
  %856 = vmatpush1.xpose.msra.mxu0 %v712
  %857 = vmatprep.subr.mxu0 0.0
  %858 = vmatpush1.xpose.msra.mxu0 %v710
  %859 = vmatprep.subr.mxu0 0.0
  %860 = vmatpush1.xpose.msra.mxu0 %v708
  %861 = vmatprep.subr.mxu0 0.0
  %862 = vmatpush2.xpose.msra.mxu0 0.0
  %863 = vmatprep.subr.mxu0 0.0
  %864 = vmatpush2.xpose.msra.mxu0 0.0
  %865 = vmatprep.subr.mxu0 0.0
  %866 = vmatpush2.xpose.msra.mxu0 0.0
  %867 = vmatprep.subr.mxu0 0.0
  %868 = vmatpush2.xpose.msra.mxu0 0.0
  %869 = vmatprep.subr.mxu0 0.0
  %870 = vmatpush2.xpose.msra.mxu0 0.0
  %871 = vmatprep.subr.mxu0 0.0
  %872 = vmatpush2.xpose.msra.mxu0 0.0
  %873 = vmatprep.subr.mxu0 0.0
  %874 = vmatpush2.xpose.msra.mxu0 0.0
  %875 = vmatprep.subr.mxu0 0.0
  %876 = vmatpush2.xpose.msra.mxu0 0.0
  %877 = vmatprep.subr.mxu0 0.0
  %878 = vmatpush2.xpose.msra.mxu0 0.0
  %879 = vmatprep.subr.mxu0 0.0
  %880 = vmatpush2.xpose.msra.mxu0 0.0
  %881 = vmatprep.subr.mxu0 0.0
  %882 = vmatpush2.xpose.msra.mxu0 0.0
  %883 = vmatprep.subr.mxu0 0.0
  %884 = vmatpush2.xpose.msra.mxu0 0.0
  %885 = vmatprep.subr.mxu0 0.0
  %886 = vmatpush2.xpose.msra.mxu0 0.0
  %887 = vmatprep.subr.mxu0 0.0
  %888 = vmatpush2.xpose.msra.mxu0 0.0
  %889 = vmatprep.subr.mxu0 0.0
  %890 = vmatpush2.xpose.msra.mxu0 0.0
  %891 = vmatprep.subr.mxu0 0.0
  %892 = vmatpush2.xpose.msra.mxu0 0.0
  %893 = vmatprep.mubr.f32.mxu0 0.0
  %894 = vmatmul.mubr.f32.gmra.mxu0 %v636
  %v895 = vpop.f32.mrf.mxu0
  %v896 = vadd.f32 %v481, %v895
  %v897 = vpop.f32.mrf.mxu0
  %898 = vmatprep.mubr.f32.mxu0 0.0
  %899 = vmatmul.mubr.f32.gmra.mxu0 %v638
  %v900 = vpop.f32.mrf.mxu0
  %v901 = vadd.f32 %v484, %v900
  %v902 = vpop.f32.mrf.mxu0
  %903 = vmatprep.mubr.f32.mxu0 0.0
  %904 = vmatmul.mubr.f32.gmra.mxu0 %v640
  %v905 = vpop.f32.mrf.mxu0
  %v906 = vadd.f32 %v487, %v905
  %v907 = vpop.f32.mrf.mxu0
  %908 = vmatprep.mubr.f32.mxu0 0.0
  %909 = vmatmul.mubr.f32.gmra.mxu0 %v642
  %v910 = vpop.f32.mrf.mxu0
  %v911 = vadd.f32 %v490, %v910
  %v912 = vpop.f32.mrf.mxu0
  %913 = vdwg.mxu0
  %v914 = vmax.f32 %v807, %v809
  %v915 = vmax.f32 %v914, %v896
  %916 = vmax.xlane.f32.xlu0 %v915
  %v917 = vpop.xlane.xlu0 %916
  %v918 = vmax.f32 %v813, %v815
  %v919 = vmax.f32 %v918, %v901
  %920 = vmax.xlane.f32.xlu0 %v919
  %v921 = vpop.xlane.xlu0 %920
  %v922 = vmax.f32 %v819, %v821
  %v923 = vmax.f32 %v922, %v906
  %924 = vmax.xlane.f32.xlu0 %v923
  %v925 = vpop.xlane.xlu0 %924
  %v926 = vmax.f32 %v825, %v827
  %v927 = vmax.f32 %v926, %v911
  %928 = vmax.xlane.f32.xlu0 %v927
  %v929 = vpop.xlane.xlu0 %928
  %v930 = vsub.f32 %v807, %v917
  %v931 = vsub.f32 %v809, %v917
  %v932 = vsub.f32 %v896, %v917
  %v933 = vsub.f32 %v813, %v921
  %v934 = vsub.f32 %v815, %v921
  %v935 = vsub.f32 %v901, %v921
  %v936 = vsub.f32 %v819, %v925
  %v937 = vsub.f32 %v821, %v925
  %v938 = vsub.f32 %v906, %v925
  %v939 = vsub.f32 %v825, %v929
  %v940 = vsub.f32 %v827, %v929
  %v941 = vsub.f32 %v911, %v929
  %v942 = vmul.f32 %v930, 1.442695
  %v943 = vpow.pop %v942
  %v944 = vmul.f32 %v931, 1.442695
  %v945 = vpow.pop %v944
  %v946 = vmul.f32 %v932, 1.442695
  %v947 = vpow.pop %v946
  %v948 = vmul.f32 %v933, 1.442695
  %v949 = vpow.pop %v948
  %v950 = vmul.f32 %v934, 1.442695
  %v951 = vpow.pop %v950
  %v952 = vmul.f32 %v935, 1.442695
  %v953 = vpow.pop %v952
  %v954 = vmul.f32 %v936, 1.442695
  %v955 = vpow.pop %v954
  %v956 = vmul.f32 %v937, 1.442695
  %v957 = vpow.pop %v956
  %v958 = vmul.f32 %v938, 1.442695
  %v959 = vpow.pop %v958
  %v960 = vmul.f32 %v939, 1.442695
  %v961 = vpow.pop %v960
  %v962 = vmul.f32 %v940, 1.442695
  %v963 = vpow.pop %v962
  %v964 = vmul.f32 %v941, 1.442695
  %v965 = vpow.pop %v964
  %v966 = vld [vmem:[%s4] sm:$0xff]
  %v967 = vld [vmem:[%s4 + $0x8] sm:$0xff]
  %v968 = vld [vmem:[%s4 + $0x10] sm:$0xff]
  %v969 = vld [vmem:[%s4 + $0x18] sm:$0xff]
  %v970 = vld [vmem:[%s4 + $0x20] sm:$0xff]
  %v971 = vld [vmem:[%s4 + $0x28] sm:$0xff]
  %v972 = vld [vmem:[%s4 + $0x30] sm:$0xff]
  %v973 = vld [vmem:[%s4 + $0x38] sm:$0xff]
  %v974 = vld [vmem:[%s4 + $0x40] sm:$0xff]
  %v975 = vld [vmem:[%s4 + $0x48] sm:$0xff]
  %v976 = vld [vmem:[%s4 + $0x50] sm:$0xff]
  %v977 = vld [vmem:[%s4 + $0x58] sm:$0xff]
  %v978 = vld [vmem:[%s4 + $0x60] sm:$0xff]
  %v979 = vld [vmem:[%s4 + $0x68] sm:$0xff]
  %v980 = vld [vmem:[%s4 + $0x70] sm:$0xff]
  %v981 = vld [vmem:[%s4 + $0x78] sm:$0xff]
  %v982 = vld [vmem:[%s4 + $0x80] sm:$0xff]
  %v983 = vld [vmem:[%s4 + $0x88] sm:$0xff]
  %v984 = vld [vmem:[%s4 + $0x90] sm:$0xff]
  %v985 = vld [vmem:[%s4 + $0x98] sm:$0xff]
  %v986 = vld [vmem:[%s4 + $0xa0] sm:$0xff]
  %v987 = vld [vmem:[%s4 + $0xa8] sm:$0xff]
  %v988 = vld [vmem:[%s4 + $0xb0] sm:$0xff]
  %v989 = vld [vmem:[%s4 + $0xb8] sm:$0xff]
  %v990 = vld [vmem:[%s4 + $0xc0] sm:$0xff]
  %v991 = vld [vmem:[%s4 + $0xc8] sm:$0xff]
  %v992 = vld [vmem:[%s4 + $0xd0] sm:$0xff]
  %v993 = vld [vmem:[%s4 + $0xd8] sm:$0xff]
  %v994 = vld [vmem:[%s4 + $0xe0] sm:$0xff]
  %v995 = vld [vmem:[%s4 + $0xe8] sm:$0xff]
  %v996 = vld [vmem:[%s4 + $0xf0] sm:$0xff]
  %v997 = vld [vmem:[%s4 + $0xf8] sm:$0xff]
  %v998 = vld [vmem:[%s4 + $0x100] sm:$0xff]
  %v999 = vld [vmem:[%s4 + $0x108] sm:$0xff]
  %v1000 = vld [vmem:[%s4 + $0x110] sm:$0xff]
  %v1001 = vld [vmem:[%s4 + $0x118] sm:$0xff]
  %v1002 = vld [vmem:[%s4 + $0x120] sm:$0xff]
  %v1003 = vld [vmem:[%s4 + $0x128] sm:$0xff]
  %v1004 = vld [vmem:[%s4 + $0x130] sm:$0xff]
  %v1005 = vld [vmem:[%s4 + $0x138] sm:$0xff]
  %v1006 = vld [vmem:[%s4 + $0x140] sm:$0xff]
  %v1007 = vld [vmem:[%s4 + $0x148] sm:$0xff]
  %v1008 = vld [vmem:[%s4 + $0x150] sm:$0xff]
  %v1009 = vld [vmem:[%s4 + $0x158] sm:$0xff]
  %v1010 = vld [vmem:[%s4 + $0x160] sm:$0xff]
  %v1011 = vld [vmem:[%s4 + $0x168] sm:$0xff]
  %v1012 = vld [vmem:[%s4 + $0x170] sm:$0xff]
  %v1013 = vld [vmem:[%s4 + $0x178] sm:$0xff]
  %v1014 = vmul.f32 %v143, %v966
  %v1015 = vmul.f32 %v149, %v967
  %v1016 = vmul.f32 %v155, %v968
  %v1017 = vmul.f32 %v161, %v969
  %v1018 = vmul.f32 %v143, %v970
  %v1019 = vmul.f32 %v149, %v971
  %v1020 = vmul.f32 %v155, %v972
  %v1021 = vmul.f32 %v161, %v973
  %v1022 = vmul.f32 %v143, %v974
  %v1023 = vmul.f32 %v149, %v975
  %v1024 = vmul.f32 %v155, %v976
  %v1025 = vmul.f32 %v161, %v977
  %v1026 = vmul.f32 %v143, %v978
  %v1027 = vmul.f32 %v149, %v979
  %v1028 = vmul.f32 %v155, %v980
  %v1029 = vmul.f32 %v161, %v981
  %v1030 = vmul.f32 %v143, %v982
  %v1031 = vmul.f32 %v149, %v983
  %v1032 = vmul.f32 %v155, %v984
  %v1033 = vmul.f32 %v161, %v985
  %v1034 = vmul.f32 %v143, %v986
  %v1035 = vmul.f32 %v149, %v987
  %v1036 = vmul.f32 %v155, %v988
  %v1037 = vmul.f32 %v161, %v989
  %v1038 = vmul.f32 %v143, %v990
  %v1039 = vmul.f32 %v149, %v991
  %v1040 = vmul.f32 %v155, %v992
  %v1041 = vmul.f32 %v161, %v993
  %v1042 = vmul.f32 %v143, %v994
  %v1043 = vmul.f32 %v149, %v995
  %v1044 = vmul.f32 %v155, %v996
  %v1045 = vmul.f32 %v161, %v997
  %v1046 = vmul.f32 %v143, %v998
  %v1047 = vmul.f32 %v149, %v999
  %v1048 = vmul.f32 %v155, %v1000
  %v1049 = vmul.f32 %v161, %v1001
  %v1050 = vmul.f32 %v143, %v1002
  %v1051 = vmul.f32 %v149, %v1003
  %v1052 = vmul.f32 %v155, %v1004
  %v1053 = vmul.f32 %v161, %v1005
  %v1054 = vmul.f32 %v143, %v1006
  %v1055 = vmul.f32 %v149, %v1007
  %v1056 = vmul.f32 %v155, %v1008
  %v1057 = vmul.f32 %v161, %v1009
  %v1058 = vmul.f32 %v143, %v1010
  %v1059 = vmul.f32 %v149, %v1011
  %v1060 = vmul.f32 %v155, %v1012
  %v1061 = vmul.f32 %v161, %v1013
  %1062 = vmatprep.subr.mxu0 0.0
  %1063 = vmatpush1.msra.mxu0 %v1029
  %1064 = vmatprep.subr.mxu0 0.0
  %1065 = vmatpush1.msra.mxu0 %v1028
  %1066 = vmatprep.subr.mxu0 0.0
  %1067 = vmatpush1.msra.mxu0 %v1027
  %1068 = vmatprep.subr.mxu0 0.0
  %1069 = vmatpush1.msra.mxu0 %v1026
  %1070 = vmatprep.subr.mxu0 0.0
  %1071 = vmatpush1.msra.mxu0 %v1025
  %1072 = vmatprep.subr.mxu0 0.0
  %1073 = vmatpush1.msra.mxu0 %v1024
  %1074 = vmatprep.subr.mxu0 0.0
  %1075 = vmatpush1.msra.mxu0 %v1023
  %1076 = vmatprep.subr.mxu0 0.0
  %1077 = vmatpush1.msra.mxu0 %v1022
  %1078 = vmatprep.subr.mxu0 0.0
  %1079 = vmatpush1.msra.mxu0 %v1021
  %1080 = vmatprep.subr.mxu0 0.0
  %1081 = vmatpush1.msra.mxu0 %v1020
  %1082 = vmatprep.subr.mxu0 0.0
  %1083 = vmatpush1.msra.mxu0 %v1019
  %1084 = vmatprep.subr.mxu0 0.0
  %1085 = vmatpush1.msra.mxu0 %v1018
  %1086 = vmatprep.subr.mxu0 0.0
  %1087 = vmatpush1.msra.mxu0 %v1017
  %1088 = vmatprep.subr.mxu0 0.0
  %1089 = vmatpush1.msra.mxu0 %v1016
  %1090 = vmatprep.subr.mxu0 0.0
  %1091 = vmatpush1.msra.mxu0 %v1015
  %1092 = vmatprep.subr.mxu0 0.0
  %1093 = vmatpush1.msra.mxu0 %v1014
  %1094 = vmatprep.subr.mxu0 0.0
  %1095 = vmatpush2.msra.mxu0 %v1045
  %1096 = vmatprep.subr.mxu0 0.0
  %1097 = vmatpush2.msra.mxu0 %v1044
  %1098 = vmatprep.subr.mxu0 0.0
  %1099 = vmatpush2.msra.mxu0 %v1043
  %1100 = vmatprep.subr.mxu0 0.0
  %1101 = vmatpush2.msra.mxu0 %v1042
  %1102 = vmatprep.subr.mxu0 0.0
  %1103 = vmatpush2.msra.mxu0 %v1041
  %1104 = vmatprep.subr.mxu0 0.0
  %1105 = vmatpush2.msra.mxu0 %v1040
  %1106 = vmatprep.subr.mxu0 0.0
  %1107 = vmatpush2.msra.mxu0 %v1039
  %1108 = vmatprep.subr.mxu0 0.0
  %1109 = vmatpush2.msra.mxu0 %v1038
  %1110 = vmatprep.subr.mxu0 0.0
  %1111 = vmatpush2.msra.mxu0 %v1037
  %1112 = vmatprep.subr.mxu0 0.0
  %1113 = vmatpush2.msra.mxu0 %v1036
  %1114 = vmatprep.subr.mxu0 0.0
  %1115 = vmatpush2.msra.mxu0 %v1035
  %1116 = vmatprep.subr.mxu0 0.0
  %1117 = vmatpush2.msra.mxu0 %v1034
  %1118 = vmatprep.subr.mxu0 0.0
  %1119 = vmatpush2.msra.mxu0 %v1033
  %1120 = vmatprep.subr.mxu0 0.0
  %1121 = vmatpush2.msra.mxu0 %v1032
  %1122 = vmatprep.subr.mxu0 0.0
  %1123 = vmatpush2.msra.mxu0 %v1031
  %1124 = vmatprep.subr.mxu0 0.0
  %1125 = vmatpush2.msra.mxu0 %v1030
  %1126 = vmatprep.mubr.f32.mxu0 %v945
  %1127 = vmatmul.mubr.f32.gmra.mxu0 %v943
  %v1128 = vpop.f32.mrf.mxu0
  %v1129 = vadd.f32 0.0, %v1128
  %v1130 = vpop.f32.mrf.mxu0
  %1131 = vmatprep.mubr.f32.mxu0 %v951
  %1132 = vmatmul.mubr.f32.gmra.mxu0 %v949
  %v1133 = vpop.f32.mrf.mxu0
  %v1134 = vadd.f32 0.0, %v1133
  %v1135 = vpop.f32.mrf.mxu0
  %1136 = vmatprep.mubr.f32.mxu0 %v957
  %1137 = vmatmul.mubr.f32.gmra.mxu0 %v955
  %v1138 = vpop.f32.mrf.mxu0
  %v1139 = vadd.f32 0.0, %v1138
  %v1140 = vpop.f32.mrf.mxu0
  %1141 = vmatprep.mubr.f32.mxu0 %v963
  %1142 = vmatmul.mubr.f32.gmra.mxu0 %v961
  %v1143 = vpop.f32.mrf.mxu0
  %v1144 = vadd.f32 0.0, %v1143
  %v1145 = vpop.f32.mrf.mxu0
  %1146 = vdwg.mxu0
  %1147 = vmatprep.subr.mxu0 0.0
  %1148 = vmatpush1.msra.mxu0 %v1061
  %1149 = vmatprep.subr.mxu0 0.0
  %1150 = vmatpush1.msra.mxu0 %v1060
  %1151 = vmatprep.subr.mxu0 0.0
  %1152 = vmatpush1.msra.mxu0 %v1059
  %1153 = vmatprep.subr.mxu0 0.0
  %1154 = vmatpush1.msra.mxu0 %v1058
  %1155 = vmatprep.subr.mxu0 0.0
  %1156 = vmatpush1.msra.mxu0 %v1057
  %1157 = vmatprep.subr.mxu0 0.0
  %1158 = vmatpush1.msra.mxu0 %v1056
  %1159 = vmatprep.subr.mxu0 0.0
  %1160 = vmatpush1.msra.mxu0 %v1055
  %1161 = vmatprep.subr.mxu0 0.0
  %1162 = vmatpush1.msra.mxu0 %v1054
  %1163 = vmatprep.subr.mxu0 0.0
  %1164 = vmatpush1.msra.mxu0 %v1053
  %1165 = vmatprep.subr.mxu0 0.0
  %1166 = vmatpush1.msra.mxu0 %v1052
  %1167 = vmatprep.subr.mxu0 0.0
  %1168 = vmatpush1.msra.mxu0 %v1051
  %1169 = vmatprep.subr.mxu0 0.0
  %1170 = vmatpush1.msra.mxu0 %v1050
  %1171 = vmatprep.subr.mxu0 0.0
  %1172 = vmatpush1.msra.mxu0 %v1049
  %1173 = vmatprep.subr.mxu0 0.0
  %1174 = vmatpush1.msra.mxu0 %v1048
  %1175 = vmatprep.subr.mxu0 0.0
  %1176 = vmatpush1.msra.mxu0 %v1047
  %1177 = vmatprep.subr.mxu0 0.0
  %1178 = vmatpush1.msra.mxu0 %v1046
  %1179 = vmatprep.subr.mxu0 0.0
  %1180 = vmatpush2.msra.mxu0 0.0
  %1181 = vmatprep.subr.mxu0 0.0
  %1182 = vmatpush2.msra.mxu0 0.0
  %1183 = vmatprep.subr.mxu0 0.0
  %1184 = vmatpush2.msra.mxu0 0.0
  %1185 = vmatprep.subr.mxu0 0.0
  %1186 = vmatpush2.msra.mxu0 0.0
  %1187 = vmatprep.subr.mxu0 0.0
  %1188 = vmatpush2.msra.mxu0 0.0
  %1189 = vmatprep.subr.mxu0 0.0
  %1190 = vmatpush2.msra.mxu0 0.0
  %1191 = vmatprep.subr.mxu0 0.0
  %1192 = vmatpush2.msra.mxu0 0.0
  %1193 = vmatprep.subr.mxu0 0.0
  %1194 = vmatpush2.msra.mxu0 0.0
  %1195 = vmatprep.subr.mxu0 0.0
  %1196 = vmatpush2.msra.mxu0 0.0
  %1197 = vmatprep.subr.mxu0 0.0
  %1198 = vmatpush2.msra.mxu0 0.0
  %1199 = vmatprep.subr.mxu0 0.0
  %1200 = vmatpush2.msra.mxu0 0.0
  %1201 = vmatprep.subr.mxu0 0.0
  %1202 = vmatpush2.msra.mxu0 0.0
  %1203 = vmatprep.subr.mxu0 0.0
  %1204 = vmatpush2.msra.mxu0 0.0
  %1205 = vmatprep.subr.mxu0 0.0
  %1206 = vmatpush2.msra.mxu0 0.0
  %1207 = vmatprep.subr.mxu0 0.0
  %1208 = vmatpush2.msra.mxu0 0.0
  %1209 = vmatprep.subr.mxu0 0.0
  %1210 = vmatpush2.msra.mxu0 0.0
  %1211 = vmatprep.mubr.f32.mxu0 0.0
  %1212 = vmatmul.mubr.f32.gmra.mxu0 %v947
  %v1213 = vpop.f32.mrf.mxu0
  %v1214 = vadd.f32 %v1129, %v1213
  %v1215 = vpop.f32.mrf.mxu0
  %1216 = vmatprep.mubr.f32.mxu0 0.0
  %1217 = vmatmul.mubr.f32.gmra.mxu0 %v953
  %v1218 = vpop.f32.mrf.mxu0
  %v1219 = vadd.f32 %v1134, %v1218
  %v1220 = vpop.f32.mrf.mxu0
  %1221 = vmatprep.mubr.f32.mxu0 0.0
  %1222 = vmatmul.mubr.f32.gmra.mxu0 %v959
  %v1223 = vpop.f32.mrf.mxu0
  %v1224 = vadd.f32 %v1139, %v1223
  %v1225 = vpop.f32.mrf.mxu0
  %1226 = vmatprep.mubr.f32.mxu0 0.0
  %1227 = vmatmul.mubr.f32.gmra.mxu0 %v965
  %v1228 = vpop.f32.mrf.mxu0
  %v1229 = vadd.f32 %v1144, %v1228
  %v1230 = vpop.f32.mrf.mxu0
  %1231 = vdwg.mxu0
  %1232 = vmatprep.subr.mxu0 0.0
  %1233 = vmatpush1.msra.mxu0 %v981
  %1234 = vmatprep.subr.mxu0 0.0
  %1235 = vmatpush1.msra.mxu0 %v980
  %1236 = vmatprep.subr.mxu0 0.0
  %1237 = vmatpush1.msra.mxu0 %v979
  %1238 = vmatprep.subr.mxu0 0.0
  %1239 = vmatpush1.msra.mxu0 %v978
  %1240 = vmatprep.subr.mxu0 0.0
  %1241 = vmatpush1.msra.mxu0 %v977
  %1242 = vmatprep.subr.mxu0 0.0
  %1243 = vmatpush1.msra.mxu0 %v976
  %1244 = vmatprep.subr.mxu0 0.0
  %1245 = vmatpush1.msra.mxu0 %v975
  %1246 = vmatprep.subr.mxu0 0.0
  %1247 = vmatpush1.msra.mxu0 %v974
  %1248 = vmatprep.subr.mxu0 0.0
  %1249 = vmatpush1.msra.mxu0 %v973
  %1250 = vmatprep.subr.mxu0 0.0
  %1251 = vmatpush1.msra.mxu0 %v972
  %1252 = vmatprep.subr.mxu0 0.0
  %1253 = vmatpush1.msra.mxu0 %v971
  %1254 = vmatprep.subr.mxu0 0.0
  %1255 = vmatpush1.msra.mxu0 %v970
  %1256 = vmatprep.subr.mxu0 0.0
  %1257 = vmatpush1.msra.mxu0 %v969
  %1258 = vmatprep.subr.mxu0 0.0
  %1259 = vmatpush1.msra.mxu0 %v968
  %1260 = vmatprep.subr.mxu0 0.0
  %1261 = vmatpush1.msra.mxu0 %v967
  %1262 = vmatprep.subr.mxu0 0.0
  %1263 = vmatpush1.msra.mxu0 %v966
  %1264 = vmatprep.subr.mxu0 0.0
  %1265 = vmatpush2.msra.mxu0 %v997
  %1266 = vmatprep.subr.mxu0 0.0
  %1267 = vmatpush2.msra.mxu0 %v996
  %1268 = vmatprep.subr.mxu0 0.0
  %1269 = vmatpush2.msra.mxu0 %v995
  %1270 = vmatprep.subr.mxu0 0.0
  %1271 = vmatpush2.msra.mxu0 %v994
  %1272 = vmatprep.subr.mxu0 0.0
  %1273 = vmatpush2.msra.mxu0 %v993
  %1274 = vmatprep.subr.mxu0 0.0
  %1275 = vmatpush2.msra.mxu0 %v992
  %1276 = vmatprep.subr.mxu0 0.0
  %1277 = vmatpush2.msra.mxu0 %v991
  %1278 = vmatprep.subr.mxu0 0.0
  %1279 = vmatpush2.msra.mxu0 %v990
  %1280 = vmatprep.subr.mxu0 0.0
  %1281 = vmatpush2.msra.mxu0 %v989
  %1282 = vmatprep.subr.mxu0 0.0
  %1283 = vmatpush2.msra.mxu0 %v988
  %1284 = vmatprep.subr.mxu0 0.0
  %1285 = vmatpush2.msra.mxu0 %v987
  %1286 = vmatprep.subr.mxu0 0.0
  %1287 = vmatpush2.msra.mxu0 %v986
  %1288 = vmatprep.subr.mxu0 0.0
  %1289 = vmatpush2.msra.mxu0 %v985
  %1290 = vmatprep.subr.mxu0 0.0
  %1291 = vmatpush2.msra.mxu0 %v984
  %1292 = vmatprep.subr.mxu0 0.0
  %1293 = vmatpush2.msra.mxu0 %v983
  %1294 = vmatprep.subr.mxu0 0.0
  %1295 = vmatpush2.msra.mxu0 %v982
  %1296 = vmatprep.mubr.f32.mxu0 %v945
  %1297 = vmatmul.mubr.f32.gmra.mxu0 %v943
  %v1298 = vpop.f32.mrf.mxu0
  %v1299 = vadd.f32 0.0, %v1298
  %v1300 = vpop.f32.mrf.mxu0
  %1301 = vmatprep.mubr.f32.mxu0 %v951
  %1302 = vmatmul.mubr.f32.gmra.mxu0 %v949
  %v1303 = vpop.f32.mrf.mxu0
  %v1304 = vadd.f32 0.0, %v1303
  %v1305 = vpop.f32.mrf.mxu0
  %1306 = vmatprep.mubr.f32.mxu0 %v957
  %1307 = vmatmul.mubr.f32.gmra.mxu0 %v955
  %v1308 = vpop.f32.mrf.mxu0
  %v1309 = vadd.f32 0.0, %v1308
  %v1310 = vpop.f32.mrf.mxu0
  %1311 = vmatprep.mubr.f32.mxu0 %v963
  %1312 = vmatmul.mubr.f32.gmra.mxu0 %v961
  %v1313 = vpop.f32.mrf.mxu0
  %v1314 = vadd.f32 0.0, %v1313
  %v1315 = vpop.f32.mrf.mxu0
  %1316 = vdwg.mxu0
  %1317 = vmatprep.subr.mxu0 0.0
  %1318 = vmatpush1.msra.mxu0 %v1013
  %1319 = vmatprep.subr.mxu0 0.0
  %1320 = vmatpush1.msra.mxu0 %v1012
  %1321 = vmatprep.subr.mxu0 0.0
  %1322 = vmatpush1.msra.mxu0 %v1011
  %1323 = vmatprep.subr.mxu0 0.0
  %1324 = vmatpush1.msra.mxu0 %v1010
  %1325 = vmatprep.subr.mxu0 0.0
  %1326 = vmatpush1.msra.mxu0 %v1009
  %1327 = vmatprep.subr.mxu0 0.0
  %1328 = vmatpush1.msra.mxu0 %v1008
  %1329 = vmatprep.subr.mxu0 0.0
  %1330 = vmatpush1.msra.mxu0 %v1007
  %1331 = vmatprep.subr.mxu0 0.0
  %1332 = vmatpush1.msra.mxu0 %v1006
  %1333 = vmatprep.subr.mxu0 0.0
  %1334 = vmatpush1.msra.mxu0 %v1005
  %1335 = vmatprep.subr.mxu0 0.0
  %1336 = vmatpush1.msra.mxu0 %v1004
  %1337 = vmatprep.subr.mxu0 0.0
  %1338 = vmatpush1.msra.mxu0 %v1003
  %1339 = vmatprep.subr.mxu0 0.0
  %1340 = vmatpush1.msra.mxu0 %v1002
  %1341 = vmatprep.subr.mxu0 0.0
  %1342 = vmatpush1.msra.mxu0 %v1001
  %1343 = vmatprep.subr.mxu0 0.0
  %1344 = vmatpush1.msra.mxu0 %v1000
  %1345 = vmatprep.subr.mxu0 0.0
  %1346 = vmatpush1.msra.mxu0 %v999
  %1347 = vmatprep.subr.mxu0 0.0
  %1348 = vmatpush1.msra.mxu0 %v998
  %1349 = vmatprep.subr.mxu0 0.0
  %1350 = vmatpush2.msra.mxu0 0.0
  %1351 = vmatprep.subr.mxu0 0.0
  %1352 = vmatpush2.msra.mxu0 0.0
  %1353 = vmatprep.subr.mxu0 0.0
  %1354 = vmatpush2.msra.mxu0 0.0
  %1355 = vmatprep.subr.mxu0 0.0
  %1356 = vmatpush2.msra.mxu0 0.0
  %1357 = vmatprep.subr.mxu0 0.0
  %1358 = vmatpush2.msra.mxu0 0.0
  %1359 = vmatprep.subr.mxu0 0.0
  %1360 = vmatpush2.msra.mxu0 0.0
  %1361 = vmatprep.subr.mxu0 0.0
  %1362 = vmatpush2.msra.mxu0 0.0
  %1363 = vmatprep.subr.mxu0 0.0
  %1364 = vmatpush2.msra.mxu0 0.0
  %1365 = vmatprep.subr.mxu0 0.0
  %1366 = vmatpush2.msra.mxu0 0.0
  %1367 = vmatprep.subr.mxu0 0.0
  %1368 = vmatpush2.msra.mxu0 0.0
  %1369 = vmatprep.subr.mxu0 0.0
  %1370 = vmatpush2.msra.mxu0 0.0
  %1371 = vmatprep.subr.mxu0 0.0
  %1372 = vmatpush2.msra.mxu0 0.0
  %1373 = vmatprep.subr.mxu0 0.0
  %1374 = vmatpush2.msra.mxu0 0.0
  %1375 = vmatprep.subr.mxu0 0.0
  %1376 = vmatpush2.msra.mxu0 0.0
  %1377 = vmatprep.subr.mxu0 0.0
  %1378 = vmatpush2.msra.mxu0 0.0
  %1379 = vmatprep.subr.mxu0 0.0
  %1380 = vmatpush2.msra.mxu0 0.0
  %1381 = vmatprep.mubr.f32.mxu0 0.0
  %1382 = vmatmul.mubr.f32.gmra.mxu0 %v947
  %v1383 = vpop.f32.mrf.mxu0
  %v1384 = vadd.f32 %v1299, %v1383
  %v1385 = vpop.f32.mrf.mxu0
  %1386 = vmatprep.mubr.f32.mxu0 0.0
  %1387 = vmatmul.mubr.f32.gmra.mxu0 %v953
  %v1388 = vpop.f32.mrf.mxu0
  %v1389 = vadd.f32 %v1304, %v1388
  %v1390 = vpop.f32.mrf.mxu0
  %1391 = vmatprep.mubr.f32.mxu0 0.0
  %1392 = vmatmul.mubr.f32.gmra.mxu0 %v959
  %v1393 = vpop.f32.mrf.mxu0
  %v1394 = vadd.f32 %v1309, %v1393
  %v1395 = vpop.f32.mrf.mxu0
  %1396 = vmatprep.mubr.f32.mxu0 0.0
  %1397 = vmatmul.mubr.f32.gmra.mxu0 %v965
  %v1398 = vpop.f32.mrf.mxu0
  %v1399 = vadd.f32 %v1314, %v1398
  %v1400 = vpop.f32.mrf.mxu0
  %1401 = vdwg.mxu0
  %v1402 = vrcp.pop %v1384
  %v1403 = vrcp.pop %v1389
  %v1404 = vrcp.pop %v1394
  %v1405 = vrcp.pop %v1399
  %v1406 = vmul.f32 %v1214, %v1402
  %v1407 = vmul.f32 %v1219, %v1403
  %v1408 = vmul.f32 %v1224, %v1404
  %v1409 = vmul.f32 %v1229, %v1405
  %v1410 = vld [vmem:[%s4 + $0x180] sm:$0xff]
  %v1411 = vld [vmem:[%s4 + $0x188] sm:$0xff]
  %v1412 = vld [vmem:[%s4 + $0x190] sm:$0xff]
  %v1413 = vld [vmem:[%s4 + $0x198] sm:$0xff]
  %v1414 = vld [vmem:[%s4 + $0x1a0] sm:$0xff]
  %v1415 = vld [vmem:[%s4 + $0x1a8] sm:$0xff]
  %v1416 = vld [vmem:[%s4 + $0x1b0] sm:$0xff]
  %v1417 = vld [vmem:[%s4 + $0x1b8] sm:$0xff]
  %v1418 = vld [vmem:[%s4 + $0x1c0] sm:$0xff]
  %v1419 = vld [vmem:[%s4 + $0x1c8] sm:$0xff]
  %v1420 = vld [vmem:[%s4 + $0x1d0] sm:$0xff]
  %v1421 = vld [vmem:[%s4 + $0x1d8] sm:$0xff]
  %v1422 = vld [vmem:[%s4 + $0x1e0] sm:$0x1]
  %v1423 = vlaneseq
  %v1424 = vshrl.u32 %v1423, 7
  %v1425 = vsub.s32 0, %v1424
  %v1426 = vrot.slane %v1422, %v1425
  %v1428 = vsel %vm61, %v1406, 0
  %v1431 = vsel %vm61, %v1407, 0
  %v1434 = vsel %vm61, %v1408, 0
  %v1437 = vsel %vm61, %v1409, 0
  %1439 = vmatprep.subr.mxu0 0.0
  %1440 = vmatpush1.msra.mxu0 0.0
  %1441 = vmatprep.subr.mxu0 0.0
  %1442 = vmatpush1.msra.mxu0 0.0
  %1443 = vmatprep.subr.mxu0 0.0
  %1444 = vmatpush1.msra.mxu0 0.0
  %1445 = vmatprep.subr.mxu0 0.0
  %1446 = vmatpush1.msra.mxu0 0.0
  %1447 = vmatprep.subr.mxu0 0.0
  %1448 = vmatpush1.msra.mxu0 %v1421
  %1449 = vmatprep.subr.mxu0 0.0
  %1450 = vmatpush1.msra.mxu0 %v1420
  %1451 = vmatprep.subr.mxu0 0.0
  %1452 = vmatpush1.msra.mxu0 %v1419
  %1453 = vmatprep.subr.mxu0 0.0
  %1454 = vmatpush1.msra.mxu0 %v1418
  %1455 = vmatprep.subr.mxu0 0.0
  %1456 = vmatpush1.msra.mxu0 %v1417
  %1457 = vmatprep.subr.mxu0 0.0
  %1458 = vmatpush1.msra.mxu0 %v1416
  %1459 = vmatprep.subr.mxu0 0.0
  %1460 = vmatpush1.msra.mxu0 %v1415
  %1461 = vmatprep.subr.mxu0 0.0
  %1462 = vmatpush1.msra.mxu0 %v1414
  %1463 = vmatprep.subr.mxu0 0.0
  %1464 = vmatpush1.msra.mxu0 %v1413
  %1465 = vmatprep.subr.mxu0 0.0
  %1466 = vmatpush1.msra.mxu0 %v1412
  %1467 = vmatprep.subr.mxu0 0.0
  %1468 = vmatpush1.msra.mxu0 %v1411
  %1469 = vmatprep.subr.mxu0 0.0
  %1470 = vmatpush1.msra.mxu0 %v1410
  %1471 = vmatprep.subr.mxu0 0.0
  %1472 = vmatpush2.msra.mxu0 0.0
  %1473 = vmatprep.subr.mxu0 0.0
  %1474 = vmatpush2.msra.mxu0 0.0
  %1475 = vmatprep.subr.mxu0 0.0
  %1476 = vmatpush2.msra.mxu0 0.0
  %1477 = vmatprep.subr.mxu0 0.0
  %1478 = vmatpush2.msra.mxu0 0.0
  %1479 = vmatprep.subr.mxu0 0.0
  %1480 = vmatpush2.msra.mxu0 0.0
  %1481 = vmatprep.subr.mxu0 0.0
  %1482 = vmatpush2.msra.mxu0 0.0
  %1483 = vmatprep.subr.mxu0 0.0
  %1484 = vmatpush2.msra.mxu0 0.0
  %1485 = vmatprep.subr.mxu0 0.0
  %1486 = vmatpush2.msra.mxu0 0.0
  %1487 = vmatprep.subr.mxu0 0.0
  %1488 = vmatpush2.msra.mxu0 0.0
  %1489 = vmatprep.subr.mxu0 0.0
  %1490 = vmatpush2.msra.mxu0 0.0
  %1491 = vmatprep.subr.mxu0 0.0
  %1492 = vmatpush2.msra.mxu0 0.0
  %1493 = vmatprep.subr.mxu0 0.0
  %1494 = vmatpush2.msra.mxu0 0.0
  %1495 = vmatprep.subr.mxu0 0.0
  %1496 = vmatpush2.msra.mxu0 0.0
  %1497 = vmatprep.subr.mxu0 0.0
  %1498 = vmatpush2.msra.mxu0 0.0
  %1499 = vmatprep.subr.mxu0 0.0
  %1500 = vmatpush2.msra.mxu0 0.0
  %1501 = vmatprep.subr.mxu0 0.0
  %1502 = vmatpush2.msra.mxu0 0.0
  %1503 = vmatprep.mubr.f32.mxu0 0.0
  %1504 = vmatmul.mubr.f32.gmra.mxu0 %v1428
  %v1505 = vpop.f32.mrf.mxu0
  %v1506 = vadd.f32 %v1426, %v1505
  %v1507 = vpop.f32.mrf.mxu0
  %1508 = vmatprep.mubr.f32.mxu0 0.0
  %1509 = vmatmul.mubr.f32.gmra.mxu0 %v1431
  %v1510 = vpop.f32.mrf.mxu0
  %v1511 = vadd.f32 %v1426, %v1510
  %v1512 = vpop.f32.mrf.mxu0
  %1513 = vmatprep.mubr.f32.mxu0 0.0
  %1514 = vmatmul.mubr.f32.gmra.mxu0 %v1434
  %v1515 = vpop.f32.mrf.mxu0
  %v1516 = vadd.f32 %v1426, %v1515
  %v1517 = vpop.f32.mrf.mxu0
  %1518 = vmatprep.mubr.f32.mxu0 0.0
  %1519 = vmatmul.mubr.f32.gmra.mxu0 %v1437
  %v1520 = vpop.f32.mrf.mxu0
  %v1521 = vadd.f32 %v1426, %v1520
  %v1522 = vpop.f32.mrf.mxu0
  %1523 = vdwg.mxu0
  %1524 = vst.msk [vmem:[%s5] sm:$0xff] %vm61, %v1506
  %1525 = vst.msk [vmem:[%s5 + $0x8] sm:$0xff] %vm61, %v1511
  %1526 = vst.msk [vmem:[%s5 + $0x10] sm:$0xff] %vm61, %v1516
  %1527 = vst.msk [vmem:[%s5 + $0x18] sm:$0xff] %vm61, %v1521
  // Predicated region
  $region22: #{window_attention_forward.1} parent=0 // pred_check
    _
  $region23: #{window_attention_forward.1} parent=0 // pred_check_branch
    %1529 = sbr.rel (0) target = $region25
  $region24: #{window_attention_forward.1} parent=0 // pred_region
    _
  $region25: #{window_attention_forward.1} parent=0 // pred_fallthru
    _
  // Predicated region
  $region26: #{window_attention_forward.1} parent=0 // pred_check
    _
  $region27: #{window_attention_forward.1} parent=0 // pred_check_branch
    %1531 = sbr.rel (0) target = $region29
  $region28: #{window_attention_forward.1} parent=0 // pred_region
    _
  $region29: #{window_attention_forward.1} parent=0 // pred_fallthru
    _

</llo_original>
